<compile_context>
chip_gen: v7x
topology: tpu7x:2x2x1
jax: 0.10.0
libtpu: 0.0.40
codegen_flags: <defaults>
</compile_context>

<pallas_src>
import functools
import math

import jax
import jax.numpy as jnp
from jax.experimental import pallas as pl
from jax.experimental.pallas import tpu as pltpu

_NEG_INF = -1000000000.0  # exact torch masked_fill value


# --------------------------------------------------------------------------
# Kernels
# --------------------------------------------------------------------------
def _sdpa_kernel(q_ref, k_ref, o_ref, *, inv_temp):
    bb, nb, lq, dk = q_ref.shape
    lk = k_ref.shape[2]
    # scale q in its native dtype (cheaper side of the matmul: Dk <= Lk)
    q = q_ref[...] * jnp.asarray(inv_temp, dtype=q_ref.dtype)
    k = k_ref[...]
    attn = jnp.einsum(
        "bqd,bkd->bqk",
        q.reshape(bb * nb, lq, dk),
        k.reshape(bb * nb, lk, dk),
        preferred_element_type=jnp.float32,
    )
    o_ref[...] = attn.reshape(bb, nb, lq, lk).astype(o_ref.dtype)


def _sdpa_masked_kernel(q_ref, k_ref, m_ref, o_ref, *, inv_temp):
    bb, nb, lq, dk = q_ref.shape
    lk = k_ref.shape[2]
    q = q_ref[...] * jnp.asarray(inv_temp, dtype=q_ref.dtype)
    k = k_ref[...]
    attn = jnp.einsum(
        "bqd,bkd->bqk",
        q.reshape(bb * nb, lq, dk),
        k.reshape(bb * nb, lk, dk),
        preferred_element_type=jnp.float32,
    )
    attn = attn.reshape(bb, nb, lq, lk)
    # mask block may have size-1 batch/head dims; VPU broadcast is free-ish.
    keep = m_ref[...].astype(jnp.int32) != 0
    attn = jnp.where(keep, attn, jnp.float32(_NEG_INF))
    o_ref[...] = attn.astype(o_ref.dtype)


# --------------------------------------------------------------------------
# Tile sizing
# --------------------------------------------------------------------------
def _vmem_capacity_bytes():
    try:
        return int(pltpu.get_tpu_info().vmem_capacity_bytes)
    except Exception:
        return 64 * 1024 * 1024  # conservative: v7x per-TensorCore VMEM


def _largest_divisor_leq(n, cap):
    cap = max(1, min(int(cap), n))
    for d in range(cap, 0, -1):
        if n % d == 0:
            return d
    return 1


def _pick_tiles(B, N, slice_bytes, budget_bytes):
    """Pick (block_b, block_n) batch/head tile sizes.

    Largest blocks that (a) fit the (double-buffered) VMEM budget and
    (b) leave >= 4 grid steps when that still keeps >= ~1 MiB per step
    (so both v7x TensorCores get >= 2 pipelined steps). When the problem is
    too small for both, prefer big steps: per-step overhead (~0.35 us)
    dominates tiny tiles on a bandwidth-bound kernel.
    """
    total = B * N
    budget_slices = max(1, budget_bytes // max(1, slice_bytes))
    desired = min(budget_slices, total)
    quarter = max(1, total // 4)
    if desired > quarter and quarter * slice_bytes >= (1 << 20):
        desired = quarter
    nb = _largest_divisor_leq(N, desired)
    bb = _largest_divisor_leq(B, max(1, desired // nb))
    return bb, nb


# --------------------------------------------------------------------------
# Wrapper
# --------------------------------------------------------------------------
def global_scaled_dot_product_attention(q, k, mask=None, temperature=None,
                                        *, block_b=None, block_n=None):
    """q: (B, N, Lq, Dk), k: (B, N, Lk, Dk), mask broadcastable to (B, N, Lq, Lk).

    Returns attn = (q / temperature) @ k^T with mask==0 positions set to -1e9
    (exact torch masked_fill semantics).
    """
    B, N, Lq, Dk = q.shape
    Bk, Nk, Lk, Dk2 = k.shape
    assert (Bk, Nk, Dk2) == (B, N, Dk), "q/k shape mismatch"
    if temperature is None:
        temperature = math.sqrt(Dk)
    inv_temp = 1.0 / float(temperature)

    out_dtype = jnp.promote_types(q.dtype, k.dtype)
    q_item = jnp.dtype(q.dtype).itemsize
    k_item = jnp.dtype(k.dtype).itemsize
    out_item = jnp.dtype(out_dtype).itemsize

    # ---- mask: keep it un-broadcast over batch/heads, 1 byte per element ----
    m = None
    if mask is not None:
        m = jnp.asarray(mask)
        # Broadcast only the (Lq, Lk) dims; batch/head dims stay at their
        # natural size (1 or B / 1 or N) so the head broadcast never hits HBM.
        m = jnp.broadcast_to(m, jnp.broadcast_shapes(m.shape, (1, 1, Lq, Lk)))
        assert m.ndim == 4 and m.shape[0] in (1, B) and m.shape[1] in (1, N), \
            "mask must be broadcastable to (B, N, Lq, Lk)"
        m = m.astype(jnp.int8)

    # ---- tile sizes from the actual VMEM capacity ----------------------------
    vmem_cap = _vmem_capacity_bytes()
    vmem_limit = max(32 << 20, min((vmem_cap * 3) // 4, 96 << 20))
    block_budget = max(1 << 20, vmem_limit // 2 - (2 << 20))  # single buffer set

    slice_bytes = (Lq * Dk * q_item + Lk * Dk * k_item + Lq * Lk * out_item
                   + (Lq * Lk if m is not None else 0))
    bb, nb = _pick_tiles(B, N, slice_bytes, block_budget)
    if block_b is not None:
        assert B % block_b == 0, "block_b must divide B"
        bb = int(block_b)
    if block_n is not None:
        assert N % block_n == 0, "block_n must divide N"
        nb = int(block_n)

    grid = (B // bb, N // nb)

    q_spec = pl.BlockSpec((bb, nb, Lq, Dk), lambda bi, ni: (bi, ni, 0, 0))
    k_spec = pl.BlockSpec((bb, nb, Lk, Dk), lambda bi, ni: (bi, ni, 0, 0))
    # Output last dim = Lk; lane-dense (unmasked vst) whenever Lk % 128 == 0.
    o_spec = pl.BlockSpec((bb, nb, Lq, Lk), lambda bi, ni: (bi, ni, 0, 0))
    out_shape = jax.ShapeDtypeStruct((B, N, Lq, Lk), out_dtype)

    bytes_accessed = (B * N * Lq * Dk * q_item + B * N * Lk * Dk * k_item
                      + B * N * Lq * Lk * out_item
                      + (int(m.size) if m is not None else 0))
    cost = pl.CostEstimate(flops=2 * B * N * Lq * Lk * Dk,
                           transcendentals=0,
                           bytes_accessed=int(bytes_accessed))
    cparams = pltpu.CompilerParams(
        dimension_semantics=("parallel", "parallel"),
        vmem_limit_bytes=int(vmem_limit),
    )

    if m is None:
        return pl.pallas_call(
            functools.partial(_sdpa_kernel, inv_temp=inv_temp),
            out_shape=out_shape,
            grid=grid,
            in_specs=[q_spec, k_spec],
            out_specs=o_spec,
            compiler_params=cparams,
            cost_estimate=cost,
        )(q, k)

    # Mask BlockSpec: index_map ignores any axis where the mask is broadcast,
    # so the same block index repeats across consecutive head (and/or batch)
    # grid steps and Pallas does not re-fetch it from HBM.
    mask_b_dep = (m.shape[0] != 1)
    mask_h_dep = (m.shape[1] != 1)
    m_blk_b = bb if mask_b_dep else 1
    m_blk_h = nb if mask_h_dep else 1

    def m_index(bi, ni):
        return (bi if mask_b_dep else 0, ni if mask_h_dep else 0, 0, 0)

    m_spec = pl.BlockSpec((m_blk_b, m_blk_h, Lq, Lk), m_index)

    return pl.pallas_call(
        functools.partial(_sdpa_masked_kernel, inv_temp=inv_temp),
        out_shape=out_shape,
        grid=grid,
        in_specs=[q_spec, k_spec, m_spec],
        out_specs=o_spec,
        compiler_params=cparams,
        cost_estimate=cost,
    )(q, k, m)


# --------------------------------------------------------------------------
# Pure-JAX reference (mirrors the PyTorch forward)
# --------------------------------------------------------------------------
def reference(q, k, mask=None, temperature=None):
    Dk = q.shape[-1]
    if temperature is None:
        temperature = math.sqrt(Dk)
    attn = jnp.einsum("bnqd,bnkd->bnqk", q / temperature, k)
    if mask is not None:
        attn = jnp.where(mask == 0, _NEG_INF, attn)
    return attn


if __name__ == "__main__":
    B, N, Lq, Lk, Dk = 2, 4, 128, 128, 64
    temperature = Dk ** 0.5

    key = jax.random.PRNGKey(0)
    kq, kk, km = jax.random.split(key, 3)
    q = jax.random.normal(kq, (B, N, Lq, Dk), jnp.float32)
    k = jax.random.normal(kk, (B, N, Lk, Dk), jnp.float32)

    # --- unmasked, auto tile sizes -----------------------------------------
    attn = jax.block_until_ready(
        global_scaled_dot_product_attention(q, k, temperature=temperature))
    ref = reference(q, k, temperature=temperature)
    assert attn.shape == (B, N, Lq, Lk)
    assert jnp.allclose(attn, ref, atol=1e-4, rtol=1e-4)

    # --- unmasked, forced multi-step grid (exercises pipelining path) ------
    attn2 = jax.block_until_ready(
        global_scaled_dot_product_attention(
            q, k, temperature=temperature, block_b=1, block_n=2))
    assert jnp.allclose(attn2, ref, atol=1e-4, rtol=1e-4)

    # --- masked path: (B, 1, Lq, Lk) mask broadcast over heads -------------
    mask = (jax.random.uniform(km, (B, 1, Lq, Lk)) > 0.2).astype(jnp.int32)
    ref_m = reference(q, k, mask=mask, temperature=temperature)

    attn_m = jax.block_until_ready(
        global_scaled_dot_product_attention(
            q, k, mask=mask, temperature=temperature))
    assert jnp.allclose(attn_m, ref_m, atol=1e-4, rtol=1e-4)

    # same, with a multi-step head grid so the un-broadcast int8 mask block
    # is actually reused across head grid steps
    attn_m2 = jax.block_until_ready(
        global_scaled_dot_product_attention(
            q, k, mask=mask, temperature=temperature, block_b=1, block_n=2))
    assert jnp.allclose(attn_m2, ref_m, atol=1e-4, rtol=1e-4)

    print("KERNEL_OK")
</pallas_src>

<mosaic_0001>
module attributes {stable_mosaic.version = 11 : i64} {
  func.func @_sdpa_kernel(%arg0: i32, %arg1: i32, %arg2: memref<2x4x128x64xf32, #tpu.memory_space<vmem>>, %arg3: memref<2x4x128x64xf32, #tpu.memory_space<vmem>>, %arg4: memref<2x4x128x128xf32, #tpu.memory_space<vmem>>) attributes {dimension_semantics = [#tpu.dimension_semantics<parallel>, #tpu.dimension_semantics<parallel>], iteration_bounds = array<i64: 1, 1>, scalar_prefetch = 0 : i64, scratch_operands = 0 : i64, tpu.core_type = #tpu.core_type<tc>, window_params = [{transform_indices = @transform_0, window_bounds = array<i64: 2, 4, 128, 64>}, {transform_indices = @transform_1, window_bounds = array<i64: 2, 4, 128, 64>}, {transform_indices = @transform_2, window_bounds = array<i64: 2, 4, 128, 128>}]} {
    %c0 = arith.constant 0 : index
    %c0_0 = arith.constant 0 : index
    %c0_1 = arith.constant 0 : index
    %c0_2 = arith.constant 0 : index
    %0 = vector.load %arg2[%c0, %c0_0, %c0_1, %c0_2] : memref<2x4x128x64xf32, #tpu.memory_space<vmem>>, vector<2x4x128x64xf32>
    %cst = arith.constant 1.250000e-01 : f32
    %1 = vector.broadcast %cst : f32 to vector<2x4x128x64xf32>
    %2 = arith.mulf %0, %1 : vector<2x4x128x64xf32>
    %c0_3 = arith.constant 0 : index
    %c0_4 = arith.constant 0 : index
    %c0_5 = arith.constant 0 : index
    %c0_6 = arith.constant 0 : index
    %3 = vector.load %arg3[%c0_3, %c0_4, %c0_5, %c0_6] : memref<2x4x128x64xf32, #tpu.memory_space<vmem>>, vector<2x4x128x64xf32>
    %4 = vector.shape_cast %2 : vector<2x4x128x64xf32> to vector<8x128x64xf32>
    %5 = vector.shape_cast %3 : vector<2x4x128x64xf32> to vector<8x128x64xf32>
    "tpu.trace_start"() <{level = 10 : i32, message = "bqd,bkd->bqk"}> : () -> ()
    %cst_7 = arith.constant dense<0.000000e+00> : vector<8x128x128xf32>
    %6 = tpu.matmul %4, %5, %cst_7 {dimension_numbers = #tpu.dot_dimension_numbers<[2], [2], [1], [1], [0, 0, 0, 1, 1, 1], [0], [0]>} : vector<8x128x64xf32>, vector<8x128x64xf32>, vector<8x128x128xf32> -> vector<8x128x128xf32>
    "tpu.trace_stop"() : () -> ()
    %7 = vector.shape_cast %6 : vector<8x128x128xf32> to vector<2x4x128x128xf32>
    %c0_8 = arith.constant 0 : index
    %c0_9 = arith.constant 0 : index
    %c0_10 = arith.constant 0 : index
    %c0_11 = arith.constant 0 : index
    %8 = vector.load %arg4[%c0_8, %c0_9, %c0_10, %c0_11] : memref<2x4x128x128xf32, #tpu.memory_space<vmem>>, vector<2x4x128x128xf32>
    tpu.vector_store %arg4[%c0_8, %c0_9, %c0_10, %c0_11], %7 {strides = array<i32>} : memref<2x4x128x128xf32, #tpu.memory_space<vmem>>, vector<2x4x128x128xf32>,
    return
  }
  func.func @transform_0(%arg0: i32, %arg1: i32) -> (i32, i32, i32, i32) {
    %c0_i32 = arith.constant 0 : i32
    %c0_i32_0 = arith.constant 0 : i32
    %c0_i32_1 = arith.constant 0 : i32
    return %arg0, %arg1, %c0_i32, %c0_i32_0 : i32, i32, i32, i32
  }
  func.func @transform_1(%arg0: i32, %arg1: i32) -> (i32, i32, i32, i32) {
    %c0_i32 = arith.constant 0 : i32
    %c0_i32_0 = arith.constant 0 : i32
    %c0_i32_1 = arith.constant 0 : i32
    return %arg0, %arg1, %c0_i32, %c0_i32_0 : i32, i32, i32, i32
  }
  func.func @transform_2(%arg0: i32, %arg1: i32) -> (i32, i32, i32, i32) {
    %c0_i32 = arith.constant 0 : i32
    %c0_i32_0 = arith.constant 0 : i32
    %c0_i32_1 = arith.constant 0 : i32
    return %arg0, %arg1, %c0_i32, %c0_i32_0 : i32, i32, i32, i32
  }
}

</mosaic_0001>

<llo_original>
// kernel: tpu_custom_call.1
$region0: #{tpu_custom_call.1}
  #allocation0 [shape = 'u32[]', space=smem, size = 0x4, offset = 0x4, fixed_abs, tag = 'smem constant byte address 0x4 - core index']
  #allocation1 [shape = 'u32[144,128]{1,0:T(1,128)}', space=vmem, size = 0x12000, scoped, tag = 'internal scratch']
  %s0 = inlined_call_operand.vmem [shape: f32[2,4,128,64], index: 0, kind: input, shape index: {}]
  %s1 = inlined_call_operand.vmem [shape: f32[2,4,128,64], index: 1, kind: input, shape index: {}]
  %s2 = inlined_call_operand.hbm [shape: f32[2,4,128,128], index: 2, kind: output, shape index: {}]
  %s3 = sld [smem:[#allocation0]]
  $region18: #{tpu_custom_call.1} parent=0
    _
  %s5 = ssub.s32 1, %s3
  %s6 = scalar_select 0, %s5, %s3
  $region1: #{tpu_custom_call.1} parent=0
    #allocation2 [shape = 'u8[524288]{0}', space=vmem, size = 0x80000, scoped, tag = 'output window, operand 0, single buffered']
    #allocation3 [shape = 's32[1]{0}', space=sflag, size = 0x4, scoped, tag = 'scoped memory for tpu_custom_call.1']
    %7 = vsyncpa [#allocation3], 0
    // Predicated region
    $region2: #{tpu_custom_call.1} parent=1 // pred_check
      _
    $region3: #{tpu_custom_call.1} parent=1 // pred_check_branch
      %9 = sbr.rel (0) target = $region5
    $region4: #{tpu_custom_call.1} parent=1 // pred_region
      _
    $region5: #{tpu_custom_call.1} parent=1 // pred_fallthru
      _
    // Predicated region
    $region6: #{tpu_custom_call.1} parent=1 // pred_check
      _
    $region7: #{tpu_custom_call.1} parent=1 // pred_check_branch
      %11 = sbr.rel (0) target = $region9
    $region8: #{tpu_custom_call.1} parent=1 // pred_region
      _
    $region9: #{tpu_custom_call.1} parent=1 // pred_fallthru
      _
    %v12 = vld [vmem:[%s0] sm:$0xff]
    %v13 = vld [vmem:[%s0 + $0x8] sm:$0xff]
    %v14 = vld [vmem:[%s0 + $0x10] sm:$0xff]
    %v15 = vld [vmem:[%s0 + $0x18] sm:$0xff]
    %v16 = vld [vmem:[%s0 + $0x20] sm:$0xff]
    %v17 = vld [vmem:[%s0 + $0x28] sm:$0xff]
    %v18 = vld [vmem:[%s0 + $0x30] sm:$0xff]
    %v19 = vld [vmem:[%s0 + $0x38] sm:$0xff]
    %v20 = vld [vmem:[%s0 + $0x40] sm:$0xff]
    %v21 = vld [vmem:[%s0 + $0x48] sm:$0xff]
    %v22 = vld [vmem:[%s0 + $0x50] sm:$0xff]
    %v23 = vld [vmem:[%s0 + $0x58] sm:$0xff]
    %v24 = vld [vmem:[%s0 + $0x60] sm:$0xff]
    %v25 = vld [vmem:[%s0 + $0x68] sm:$0xff]
    %v26 = vld [vmem:[%s0 + $0x70] sm:$0xff]
    %v27 = vld [vmem:[%s0 + $0x78] sm:$0xff]
    %v28 = vld [vmem:[%s0 + $0x80] sm:$0xff]
    %v29 = vld [vmem:[%s0 + $0x88] sm:$0xff]
    %v30 = vld [vmem:[%s0 + $0x90] sm:$0xff]
    %v31 = vld [vmem:[%s0 + $0x98] sm:$0xff]
    %v32 = vld [vmem:[%s0 + $0xa0] sm:$0xff]
    %v33 = vld [vmem:[%s0 + $0xa8] sm:$0xff]
    %v34 = vld [vmem:[%s0 + $0xb0] sm:$0xff]
    %v35 = vld [vmem:[%s0 + $0xb8] sm:$0xff]
    %v36 = vld [vmem:[%s0 + $0xc0] sm:$0xff]
    %v37 = vld [vmem:[%s0 + $0xc8] sm:$0xff]
    %v38 = vld [vmem:[%s0 + $0xd0] sm:$0xff]
    %v39 = vld [vmem:[%s0 + $0xd8] sm:$0xff]
    %v40 = vld [vmem:[%s0 + $0xe0] sm:$0xff]
    %v41 = vld [vmem:[%s0 + $0xe8] sm:$0xff]
    %v42 = vld [vmem:[%s0 + $0xf0] sm:$0xff]
    %v43 = vld [vmem:[%s0 + $0xf8] sm:$0xff]
    %v44 = vld [vmem:[%s0 + $0x100] sm:$0xff]
    %v45 = vld [vmem:[%s0 + $0x108] sm:$0xff]
    %v46 = vld [vmem:[%s0 + $0x110] sm:$0xff]
    %v47 = vld [vmem:[%s0 + $0x118] sm:$0xff]
    %v48 = vld [vmem:[%s0 + $0x120] sm:$0xff]
    %v49 = vld [vmem:[%s0 + $0x128] sm:$0xff]
    %v50 = vld [vmem:[%s0 + $0x130] sm:$0xff]
    %v51 = vld [vmem:[%s0 + $0x138] sm:$0xff]
    %v52 = vld [vmem:[%s0 + $0x140] sm:$0xff]
    %v53 = vld [vmem:[%s0 + $0x148] sm:$0xff]
    %v54 = vld [vmem:[%s0 + $0x150] sm:$0xff]
    %v55 = vld [vmem:[%s0 + $0x158] sm:$0xff]
    %v56 = vld [vmem:[%s0 + $0x160] sm:$0xff]
    %v57 = vld [vmem:[%s0 + $0x168] sm:$0xff]
    %v58 = vld [vmem:[%s0 + $0x170] sm:$0xff]
    %v59 = vld [vmem:[%s0 + $0x178] sm:$0xff]
    %v60 = vld [vmem:[%s0 + $0x180] sm:$0xff]
    %v61 = vld [vmem:[%s0 + $0x188] sm:$0xff]
    %v62 = vld [vmem:[%s0 + $0x190] sm:$0xff]
    %v63 = vld [vmem:[%s0 + $0x198] sm:$0xff]
    %v64 = vld [vmem:[%s0 + $0x1a0] sm:$0xff]
    %v65 = vld [vmem:[%s0 + $0x1a8] sm:$0xff]
    %v66 = vld [vmem:[%s0 + $0x1b0] sm:$0xff]
    %v67 = vld [vmem:[%s0 + $0x1b8] sm:$0xff]
    %v68 = vld [vmem:[%s0 + $0x1c0] sm:$0xff]
    %v69 = vld [vmem:[%s0 + $0x1c8] sm:$0xff]
    %v70 = vld [vmem:[%s0 + $0x1d0] sm:$0xff]
    %v71 = vld [vmem:[%s0 + $0x1d8] sm:$0xff]
    %v72 = vld [vmem:[%s0 + $0x1e0] sm:$0xff]
    %v73 = vld [vmem:[%s0 + $0x1e8] sm:$0xff]
    %v74 = vld [vmem:[%s0 + $0x1f0] sm:$0xff]
    %v75 = vld [vmem:[%s0 + $0x1f8] sm:$0xff]
    %v76 = vld [vmem:[%s0 + $0x200] sm:$0xff]
    %v77 = vld [vmem:[%s0 + $0x208] sm:$0xff]
    %v78 = vld [vmem:[%s0 + $0x210] sm:$0xff]
    %v79 = vld [vmem:[%s0 + $0x218] sm:$0xff]
    %v80 = vld [vmem:[%s0 + $0x220] sm:$0xff]
    %v81 = vld [vmem:[%s0 + $0x228] sm:$0xff]
    %v82 = vld [vmem:[%s0 + $0x230] sm:$0xff]
    %v83 = vld [vmem:[%s0 + $0x238] sm:$0xff]
    %v84 = vld [vmem:[%s0 + $0x240] sm:$0xff]
    %v85 = vld [vmem:[%s0 + $0x248] sm:$0xff]
    %v86 = vld [vmem:[%s0 + $0x250] sm:$0xff]
    %v87 = vld [vmem:[%s0 + $0x258] sm:$0xff]
    %v88 = vld [vmem:[%s0 + $0x260] sm:$0xff]
    %v89 = vld [vmem:[%s0 + $0x268] sm:$0xff]
    %v90 = vld [vmem:[%s0 + $0x270] sm:$0xff]
    %v91 = vld [vmem:[%s0 + $0x278] sm:$0xff]
    %v92 = vld [vmem:[%s0 + $0x280] sm:$0xff]
    %v93 = vld [vmem:[%s0 + $0x288] sm:$0xff]
    %v94 = vld [vmem:[%s0 + $0x290] sm:$0xff]
    %v95 = vld [vmem:[%s0 + $0x298] sm:$0xff]
    %v96 = vld [vmem:[%s0 + $0x2a0] sm:$0xff]
    %v97 = vld [vmem:[%s0 + $0x2a8] sm:$0xff]
    %v98 = vld [vmem:[%s0 + $0x2b0] sm:$0xff]
    %v99 = vld [vmem:[%s0 + $0x2b8] sm:$0xff]
    %v100 = vld [vmem:[%s0 + $0x2c0] sm:$0xff]
    %v101 = vld [vmem:[%s0 + $0x2c8] sm:$0xff]
    %v102 = vld [vmem:[%s0 + $0x2d0] sm:$0xff]
    %v103 = vld [vmem:[%s0 + $0x2d8] sm:$0xff]
    %v104 = vld [vmem:[%s0 + $0x2e0] sm:$0xff]
    %v105 = vld [vmem:[%s0 + $0x2e8] sm:$0xff]
    %v106 = vld [vmem:[%s0 + $0x2f0] sm:$0xff]
    %v107 = vld [vmem:[%s0 + $0x2f8] sm:$0xff]
    %v108 = vld [vmem:[%s0 + $0x300] sm:$0xff]
    %v109 = vld [vmem:[%s0 + $0x308] sm:$0xff]
    %v110 = vld [vmem:[%s0 + $0x310] sm:$0xff]
    %v111 = vld [vmem:[%s0 + $0x318] sm:$0xff]
    %v112 = vld [vmem:[%s0 + $0x320] sm:$0xff]
    %v113 = vld [vmem:[%s0 + $0x328] sm:$0xff]
    %v114 = vld [vmem:[%s0 + $0x330] sm:$0xff]
    %v115 = vld [vmem:[%s0 + $0x338] sm:$0xff]
    %v116 = vld [vmem:[%s0 + $0x340] sm:$0xff]
    %v117 = vld [vmem:[%s0 + $0x348] sm:$0xff]
    %v118 = vld [vmem:[%s0 + $0x350] sm:$0xff]
    %v119 = vld [vmem:[%s0 + $0x358] sm:$0xff]
    %v120 = vld [vmem:[%s0 + $0x360] sm:$0xff]
    %v121 = vld [vmem:[%s0 + $0x368] sm:$0xff]
    %v122 = vld [vmem:[%s0 + $0x370] sm:$0xff]
    %v123 = vld [vmem:[%s0 + $0x378] sm:$0xff]
    %v124 = vld [vmem:[%s0 + $0x380] sm:$0xff]
    %v125 = vld [vmem:[%s0 + $0x388] sm:$0xff]
    %v126 = vld [vmem:[%s0 + $0x390] sm:$0xff]
    %v127 = vld [vmem:[%s0 + $0x398] sm:$0xff]
    %v128 = vld [vmem:[%s0 + $0x3a0] sm:$0xff]
    %v129 = vld [vmem:[%s0 + $0x3a8] sm:$0xff]
    %v130 = vld [vmem:[%s0 + $0x3b0] sm:$0xff]
    %v131 = vld [vmem:[%s0 + $0x3b8] sm:$0xff]
    %v132 = vld [vmem:[%s0 + $0x3c0] sm:$0xff]
    %v133 = vld [vmem:[%s0 + $0x3c8] sm:$0xff]
    %v134 = vld [vmem:[%s0 + $0x3d0] sm:$0xff]
    %v135 = vld [vmem:[%s0 + $0x3d8] sm:$0xff]
    %v136 = vld [vmem:[%s0 + $0x3e0] sm:$0xff]
    %v137 = vld [vmem:[%s0 + $0x3e8] sm:$0xff]
    %v138 = vld [vmem:[%s0 + $0x3f0] sm:$0xff]
    %v139 = vld [vmem:[%s0 + $0x3f8] sm:$0xff]
    %v140 = vmul.f32 %v12, 0.125
    %v141 = vmul.f32 %v13, 0.125
    %v142 = vmul.f32 %v14, 0.125
    %v143 = vmul.f32 %v15, 0.125
    %v144 = vmul.f32 %v16, 0.125
    %v145 = vmul.f32 %v17, 0.125
    %v146 = vmul.f32 %v18, 0.125
    %v147 = vmul.f32 %v19, 0.125
    %v148 = vmul.f32 %v20, 0.125
    %v149 = vmul.f32 %v21, 0.125
    %v150 = vmul.f32 %v22, 0.125
    %v151 = vmul.f32 %v23, 0.125
    %v152 = vmul.f32 %v24, 0.125
    %v153 = vmul.f32 %v25, 0.125
    %v154 = vmul.f32 %v26, 0.125
    %v155 = vmul.f32 %v27, 0.125
    %v156 = vmul.f32 %v28, 0.125
    %v157 = vmul.f32 %v29, 0.125
    %v158 = vmul.f32 %v30, 0.125
    %v159 = vmul.f32 %v31, 0.125
    %v160 = vmul.f32 %v32, 0.125
    %v161 = vmul.f32 %v33, 0.125
    %v162 = vmul.f32 %v34, 0.125
    %v163 = vmul.f32 %v35, 0.125
    %v164 = vmul.f32 %v36, 0.125
    %v165 = vmul.f32 %v37, 0.125
    %v166 = vmul.f32 %v38, 0.125
    %v167 = vmul.f32 %v39, 0.125
    %v168 = vmul.f32 %v40, 0.125
    %v169 = vmul.f32 %v41, 0.125
    %v170 = vmul.f32 %v42, 0.125
    %v171 = vmul.f32 %v43, 0.125
    %v172 = vmul.f32 %v44, 0.125
    %v173 = vmul.f32 %v45, 0.125
    %v174 = vmul.f32 %v46, 0.125
    %v175 = vmul.f32 %v47, 0.125
    %v176 = vmul.f32 %v48, 0.125
    %v177 = vmul.f32 %v49, 0.125
    %v178 = vmul.f32 %v50, 0.125
    %v179 = vmul.f32 %v51, 0.125
    %v180 = vmul.f32 %v52, 0.125
    %v181 = vmul.f32 %v53, 0.125
    %v182 = vmul.f32 %v54, 0.125
    %v183 = vmul.f32 %v55, 0.125
    %v184 = vmul.f32 %v56, 0.125
    %v185 = vmul.f32 %v57, 0.125
    %v186 = vmul.f32 %v58, 0.125
    %v187 = vmul.f32 %v59, 0.125
    %v188 = vmul.f32 %v60, 0.125
    %v189 = vmul.f32 %v61, 0.125
    %v190 = vmul.f32 %v62, 0.125
    %v191 = vmul.f32 %v63, 0.125
    %v192 = vmul.f32 %v64, 0.125
    %v193 = vmul.f32 %v65, 0.125
    %v194 = vmul.f32 %v66, 0.125
    %v195 = vmul.f32 %v67, 0.125
    %v196 = vmul.f32 %v68, 0.125
    %v197 = vmul.f32 %v69, 0.125
    %v198 = vmul.f32 %v70, 0.125
    %v199 = vmul.f32 %v71, 0.125
    %v200 = vmul.f32 %v72, 0.125
    %v201 = vmul.f32 %v73, 0.125
    %v202 = vmul.f32 %v74, 0.125
    %v203 = vmul.f32 %v75, 0.125
    %v204 = vmul.f32 %v76, 0.125
    %v205 = vmul.f32 %v77, 0.125
    %v206 = vmul.f32 %v78, 0.125
    %v207 = vmul.f32 %v79, 0.125
    %v208 = vmul.f32 %v80, 0.125
    %v209 = vmul.f32 %v81, 0.125
    %v210 = vmul.f32 %v82, 0.125
    %v211 = vmul.f32 %v83, 0.125
    %v212 = vmul.f32 %v84, 0.125
    %v213 = vmul.f32 %v85, 0.125
    %v214 = vmul.f32 %v86, 0.125
    %v215 = vmul.f32 %v87, 0.125
    %v216 = vmul.f32 %v88, 0.125
    %v217 = vmul.f32 %v89, 0.125
    %v218 = vmul.f32 %v90, 0.125
    %v219 = vmul.f32 %v91, 0.125
    %v220 = vmul.f32 %v92, 0.125
    %v221 = vmul.f32 %v93, 0.125
    %v222 = vmul.f32 %v94, 0.125
    %v223 = vmul.f32 %v95, 0.125
    %v224 = vmul.f32 %v96, 0.125
    %v225 = vmul.f32 %v97, 0.125
    %v226 = vmul.f32 %v98, 0.125
    %v227 = vmul.f32 %v99, 0.125
    %v228 = vmul.f32 %v100, 0.125
    %v229 = vmul.f32 %v101, 0.125
    %v230 = vmul.f32 %v102, 0.125
    %v231 = vmul.f32 %v103, 0.125
    %v232 = vmul.f32 %v104, 0.125
    %v233 = vmul.f32 %v105, 0.125
    %v234 = vmul.f32 %v106, 0.125
    %v235 = vmul.f32 %v107, 0.125
    %v236 = vmul.f32 %v108, 0.125
    %v237 = vmul.f32 %v109, 0.125
    %v238 = vmul.f32 %v110, 0.125
    %v239 = vmul.f32 %v111, 0.125
    %v240 = vmul.f32 %v112, 0.125
    %v241 = vmul.f32 %v113, 0.125
    %v242 = vmul.f32 %v114, 0.125
    %v243 = vmul.f32 %v115, 0.125
    %v244 = vmul.f32 %v116, 0.125
    %v245 = vmul.f32 %v117, 0.125
    %v246 = vmul.f32 %v118, 0.125
    %v247 = vmul.f32 %v119, 0.125
    %v248 = vmul.f32 %v120, 0.125
    %v249 = vmul.f32 %v121, 0.125
    %v250 = vmul.f32 %v122, 0.125
    %v251 = vmul.f32 %v123, 0.125
    %v252 = vmul.f32 %v124, 0.125
    %v253 = vmul.f32 %v125, 0.125
    %v254 = vmul.f32 %v126, 0.125
    %v255 = vmul.f32 %v127, 0.125
    %v256 = vmul.f32 %v128, 0.125
    %v257 = vmul.f32 %v129, 0.125
    %v258 = vmul.f32 %v130, 0.125
    %v259 = vmul.f32 %v131, 0.125
    %v260 = vmul.f32 %v132, 0.125
    %v261 = vmul.f32 %v133, 0.125
    %v262 = vmul.f32 %v134, 0.125
    %v263 = vmul.f32 %v135, 0.125
    %v264 = vmul.f32 %v136, 0.125
    %v265 = vmul.f32 %v137, 0.125
    %v266 = vmul.f32 %v138, 0.125
    %v267 = vmul.f32 %v139, 0.125
    %v268 = vld [vmem:[%s1] sm:$0xff]
    %v269 = vld [vmem:[%s1 + $0x8] sm:$0xff]
    %v270 = vld [vmem:[%s1 + $0x10] sm:$0xff]
    %v271 = vld [vmem:[%s1 + $0x18] sm:$0xff]
    %v272 = vld [vmem:[%s1 + $0x20] sm:$0xff]
    %v273 = vld [vmem:[%s1 + $0x28] sm:$0xff]
    %v274 = vld [vmem:[%s1 + $0x30] sm:$0xff]
    %v275 = vld [vmem:[%s1 + $0x38] sm:$0xff]
    %v276 = vld [vmem:[%s1 + $0x40] sm:$0xff]
    %v277 = vld [vmem:[%s1 + $0x48] sm:$0xff]
    %v278 = vld [vmem:[%s1 + $0x50] sm:$0xff]
    %v279 = vld [vmem:[%s1 + $0x58] sm:$0xff]
    %v280 = vld [vmem:[%s1 + $0x60] sm:$0xff]
    %v281 = vld [vmem:[%s1 + $0x68] sm:$0xff]
    %v282 = vld [vmem:[%s1 + $0x70] sm:$0xff]
    %v283 = vld [vmem:[%s1 + $0x78] sm:$0xff]
    %v284 = vld [vmem:[%s1 + $0x80] sm:$0xff]
    %v285 = vld [vmem:[%s1 + $0x88] sm:$0xff]
    %v286 = vld [vmem:[%s1 + $0x90] sm:$0xff]
    %v287 = vld [vmem:[%s1 + $0x98] sm:$0xff]
    %v288 = vld [vmem:[%s1 + $0xa0] sm:$0xff]
    %v289 = vld [vmem:[%s1 + $0xa8] sm:$0xff]
    %v290 = vld [vmem:[%s1 + $0xb0] sm:$0xff]
    %v291 = vld [vmem:[%s1 + $0xb8] sm:$0xff]
    %v292 = vld [vmem:[%s1 + $0xc0] sm:$0xff]
    %v293 = vld [vmem:[%s1 + $0xc8] sm:$0xff]
    %v294 = vld [vmem:[%s1 + $0xd0] sm:$0xff]
    %v295 = vld [vmem:[%s1 + $0xd8] sm:$0xff]
    %v296 = vld [vmem:[%s1 + $0xe0] sm:$0xff]
    %v297 = vld [vmem:[%s1 + $0xe8] sm:$0xff]
    %v298 = vld [vmem:[%s1 + $0xf0] sm:$0xff]
    %v299 = vld [vmem:[%s1 + $0xf8] sm:$0xff]
    %v300 = vld [vmem:[%s1 + $0x100] sm:$0xff]
    %v301 = vld [vmem:[%s1 + $0x108] sm:$0xff]
    %v302 = vld [vmem:[%s1 + $0x110] sm:$0xff]
    %v303 = vld [vmem:[%s1 + $0x118] sm:$0xff]
    %v304 = vld [vmem:[%s1 + $0x120] sm:$0xff]
    %v305 = vld [vmem:[%s1 + $0x128] sm:$0xff]
    %v306 = vld [vmem:[%s1 + $0x130] sm:$0xff]
    %v307 = vld [vmem:[%s1 + $0x138] sm:$0xff]
    %v308 = vld [vmem:[%s1 + $0x140] sm:$0xff]
    %v309 = vld [vmem:[%s1 + $0x148] sm:$0xff]
    %v310 = vld [vmem:[%s1 + $0x150] sm:$0xff]
    %v311 = vld [vmem:[%s1 + $0x158] sm:$0xff]
    %v312 = vld [vmem:[%s1 + $0x160] sm:$0xff]
    %v313 = vld [vmem:[%s1 + $0x168] sm:$0xff]
    %v314 = vld [vmem:[%s1 + $0x170] sm:$0xff]
    %v315 = vld [vmem:[%s1 + $0x178] sm:$0xff]
    %v316 = vld [vmem:[%s1 + $0x180] sm:$0xff]
    %v317 = vld [vmem:[%s1 + $0x188] sm:$0xff]
    %v318 = vld [vmem:[%s1 + $0x190] sm:$0xff]
    %v319 = vld [vmem:[%s1 + $0x198] sm:$0xff]
    %v320 = vld [vmem:[%s1 + $0x1a0] sm:$0xff]
    %v321 = vld [vmem:[%s1 + $0x1a8] sm:$0xff]
    %v322 = vld [vmem:[%s1 + $0x1b0] sm:$0xff]
    %v323 = vld [vmem:[%s1 + $0x1b8] sm:$0xff]
    %v324 = vld [vmem:[%s1 + $0x1c0] sm:$0xff]
    %v325 = vld [vmem:[%s1 + $0x1c8] sm:$0xff]
    %v326 = vld [vmem:[%s1 + $0x1d0] sm:$0xff]
    %v327 = vld [vmem:[%s1 + $0x1d8] sm:$0xff]
    %v328 = vld [vmem:[%s1 + $0x1e0] sm:$0xff]
    %v329 = vld [vmem:[%s1 + $0x1e8] sm:$0xff]
    %v330 = vld [vmem:[%s1 + $0x1f0] sm:$0xff]
    %v331 = vld [vmem:[%s1 + $0x1f8] sm:$0xff]
    %v332 = vld [vmem:[%s1 + $0x200] sm:$0xff]
    %v333 = vld [vmem:[%s1 + $0x208] sm:$0xff]
    %v334 = vld [vmem:[%s1 + $0x210] sm:$0xff]
    %v335 = vld [vmem:[%s1 + $0x218] sm:$0xff]
    %v336 = vld [vmem:[%s1 + $0x220] sm:$0xff]
    %v337 = vld [vmem:[%s1 + $0x228] sm:$0xff]
    %v338 = vld [vmem:[%s1 + $0x230] sm:$0xff]
    %v339 = vld [vmem:[%s1 + $0x238] sm:$0xff]
    %v340 = vld [vmem:[%s1 + $0x240] sm:$0xff]
    %v341 = vld [vmem:[%s1 + $0x248] sm:$0xff]
    %v342 = vld [vmem:[%s1 + $0x250] sm:$0xff]
    %v343 = vld [vmem:[%s1 + $0x258] sm:$0xff]
    %v344 = vld [vmem:[%s1 + $0x260] sm:$0xff]
    %v345 = vld [vmem:[%s1 + $0x268] sm:$0xff]
    %v346 = vld [vmem:[%s1 + $0x270] sm:$0xff]
    %v347 = vld [vmem:[%s1 + $0x278] sm:$0xff]
    %v348 = vld [vmem:[%s1 + $0x280] sm:$0xff]
    %v349 = vld [vmem:[%s1 + $0x288] sm:$0xff]
    %v350 = vld [vmem:[%s1 + $0x290] sm:$0xff]
    %v351 = vld [vmem:[%s1 + $0x298] sm:$0xff]
    %v352 = vld [vmem:[%s1 + $0x2a0] sm:$0xff]
    %v353 = vld [vmem:[%s1 + $0x2a8] sm:$0xff]
    %v354 = vld [vmem:[%s1 + $0x2b0] sm:$0xff]
    %v355 = vld [vmem:[%s1 + $0x2b8] sm:$0xff]
    %v356 = vld [vmem:[%s1 + $0x2c0] sm:$0xff]
    %v357 = vld [vmem:[%s1 + $0x2c8] sm:$0xff]
    %v358 = vld [vmem:[%s1 + $0x2d0] sm:$0xff]
    %v359 = vld [vmem:[%s1 + $0x2d8] sm:$0xff]
    %v360 = vld [vmem:[%s1 + $0x2e0] sm:$0xff]
    %v361 = vld [vmem:[%s1 + $0x2e8] sm:$0xff]
    %v362 = vld [vmem:[%s1 + $0x2f0] sm:$0xff]
    %v363 = vld [vmem:[%s1 + $0x2f8] sm:$0xff]
    %v364 = vld [vmem:[%s1 + $0x300] sm:$0xff]
    %v365 = vld [vmem:[%s1 + $0x308] sm:$0xff]
    %v366 = vld [vmem:[%s1 + $0x310] sm:$0xff]
    %v367 = vld [vmem:[%s1 + $0x318] sm:$0xff]
    %v368 = vld [vmem:[%s1 + $0x320] sm:$0xff]
    %v369 = vld [vmem:[%s1 + $0x328] sm:$0xff]
    %v370 = vld [vmem:[%s1 + $0x330] sm:$0xff]
    %v371 = vld [vmem:[%s1 + $0x338] sm:$0xff]
    %v372 = vld [vmem:[%s1 + $0x340] sm:$0xff]
    %v373 = vld [vmem:[%s1 + $0x348] sm:$0xff]
    %v374 = vld [vmem:[%s1 + $0x350] sm:$0xff]
    %v375 = vld [vmem:[%s1 + $0x358] sm:$0xff]
    %v376 = vld [vmem:[%s1 + $0x360] sm:$0xff]
    %v377 = vld [vmem:[%s1 + $0x368] sm:$0xff]
    %v378 = vld [vmem:[%s1 + $0x370] sm:$0xff]
    %v379 = vld [vmem:[%s1 + $0x378] sm:$0xff]
    %v380 = vld [vmem:[%s1 + $0x380] sm:$0xff]
    %v381 = vld [vmem:[%s1 + $0x388] sm:$0xff]
    %v382 = vld [vmem:[%s1 + $0x390] sm:$0xff]
    %v383 = vld [vmem:[%s1 + $0x398] sm:$0xff]
    %v384 = vld [vmem:[%s1 + $0x3a0] sm:$0xff]
    %v385 = vld [vmem:[%s1 + $0x3a8] sm:$0xff]
    %v386 = vld [vmem:[%s1 + $0x3b0] sm:$0xff]
    %v387 = vld [vmem:[%s1 + $0x3b8] sm:$0xff]
    %v388 = vld [vmem:[%s1 + $0x3c0] sm:$0xff]
    %v389 = vld [vmem:[%s1 + $0x3c8] sm:$0xff]
    %v390 = vld [vmem:[%s1 + $0x3d0] sm:$0xff]
    %v391 = vld [vmem:[%s1 + $0x3d8] sm:$0xff]
    %v392 = vld [vmem:[%s1 + $0x3e0] sm:$0xff]
    %v393 = vld [vmem:[%s1 + $0x3e8] sm:$0xff]
    %v394 = vld [vmem:[%s1 + $0x3f0] sm:$0xff]
    %v395 = vld [vmem:[%s1 + $0x3f8] sm:$0xff]
    %vm396 = vcmask 523264
    %v398 = vsel %vm396, %v140, 0
    %v401 = vsel %vm396, %v141, 0
    %v404 = vsel %vm396, %v142, 0
    %v407 = vsel %vm396, %v143, 0
    %v410 = vsel %vm396, %v144, 0
    %v413 = vsel %vm396, %v145, 0
    %v416 = vsel %vm396, %v146, 0
    %v419 = vsel %vm396, %v147, 0
    %v422 = vsel %vm396, %v148, 0
    %v425 = vsel %vm396, %v149, 0
    %v428 = vsel %vm396, %v150, 0
    %v431 = vsel %vm396, %v151, 0
    %v434 = vsel %vm396, %v152, 0
    %v437 = vsel %vm396, %v153, 0
    %v440 = vsel %vm396, %v154, 0
    %v443 = vsel %vm396, %v155, 0
    %v446 = vsel %vm396, %v268, 0
    %v449 = vsel %vm396, %v269, 0
    %v452 = vsel %vm396, %v270, 0
    %v455 = vsel %vm396, %v271, 0
    %v458 = vsel %vm396, %v272, 0
    %v461 = vsel %vm396, %v273, 0
    %v464 = vsel %vm396, %v274, 0
    %v467 = vsel %vm396, %v275, 0
    %v470 = vsel %vm396, %v276, 0
    %v473 = vsel %vm396, %v277, 0
    %v476 = vsel %vm396, %v278, 0
    %v479 = vsel %vm396, %v279, 0
    %v482 = vsel %vm396, %v280, 0
    %v485 = vsel %vm396, %v281, 0
    %v488 = vsel %vm396, %v282, 0
    %v491 = vsel %vm396, %v283, 0
    %493 = vmatprep.subr.mxu0 0.0
    %494 = vmatpush1.xpose.msra.mxu0 %v446
    %495 = vmatprep.subr.mxu0 0.0
    %496 = vmatpush1.xpose.msra.mxu0 %v449
    %497 = vmatprep.subr.mxu0 0.0
    %498 = vmatpush1.xpose.msra.mxu0 %v452
    %499 = vmatprep.subr.mxu0 0.0
    %500 = vmatpush1.xpose.msra.mxu0 %v455
    %501 = vmatprep.subr.mxu0 0.0
    %502 = vmatpush1.xpose.msra.mxu0 %v458
    %503 = vmatprep.subr.mxu0 0.0
    %504 = vmatpush1.xpose.msra.mxu0 %v461
    %505 = vmatprep.subr.mxu0 0.0
    %506 = vmatpush1.xpose.msra.mxu0 %v464
    %507 = vmatprep.subr.mxu0 0.0
    %508 = vmatpush1.xpose.msra.mxu0 %v467
    %509 = vmatprep.subr.mxu0 0.0
    %510 = vmatpush1.xpose.msra.mxu0 %v470
    %511 = vmatprep.subr.mxu0 0.0
    %512 = vmatpush1.xpose.msra.mxu0 %v473
    %513 = vmatprep.subr.mxu0 0.0
    %514 = vmatpush1.xpose.msra.mxu0 %v476
    %515 = vmatprep.subr.mxu0 0.0
    %516 = vmatpush1.xpose.msra.mxu0 %v479
    %517 = vmatprep.subr.mxu0 0.0
    %518 = vmatpush1.xpose.msra.mxu0 %v482
    %519 = vmatprep.subr.mxu0 0.0
    %520 = vmatpush1.xpose.msra.mxu0 %v485
    %521 = vmatprep.subr.mxu0 0.0
    %522 = vmatpush1.xpose.msra.mxu0 %v488
    %523 = vmatprep.subr.mxu0 0.0
    %524 = vmatpush1.xpose.msra.mxu0 %v491
    %525 = vmatprep.subr.mxu0 0.0
    %526 = vmatpush1.xpose.msra.mxu0 0.0
    %527 = vmatprep.subr.mxu0 0.0
    %528 = vmatpush1.xpose.msra.mxu0 0.0
    %529 = vmatprep.subr.mxu0 0.0
    %530 = vmatpush1.xpose.msra.mxu0 0.0
    %531 = vmatprep.subr.mxu0 0.0
    %532 = vmatpush1.xpose.msra.mxu0 0.0
    %533 = vmatprep.subr.mxu0 0.0
    %534 = vmatpush1.xpose.msra.mxu0 0.0
    %535 = vmatprep.subr.mxu0 0.0
    %536 = vmatpush1.xpose.msra.mxu0 0.0
    %537 = vmatprep.subr.mxu0 0.0
    %538 = vmatpush1.xpose.msra.mxu0 0.0
    %539 = vmatprep.subr.mxu0 0.0
    %540 = vmatpush1.xpose.msra.mxu0 0.0
    %541 = vmatprep.subr.mxu0 0.0
    %542 = vmatpush1.xpose.msra.mxu0 0.0
    %543 = vmatprep.subr.mxu0 0.0
    %544 = vmatpush1.xpose.msra.mxu0 0.0
    %545 = vmatprep.subr.mxu0 0.0
    %546 = vmatpush1.xpose.msra.mxu0 0.0
    %547 = vmatprep.subr.mxu0 0.0
    %548 = vmatpush1.xpose.msra.mxu0 0.0
    %549 = vmatprep.subr.mxu0 0.0
    %550 = vmatpush1.xpose.msra.mxu0 0.0
    %551 = vmatprep.subr.mxu0 0.0
    %552 = vmatpush1.xpose.msra.mxu0 0.0
    %553 = vmatprep.subr.mxu0 0.0
    %554 = vmatpush1.xpose.msra.mxu0 0.0
    %555 = vmatprep.subr.mxu0 0.0
    %556 = vmatpush1.xpose.msra.mxu0 0.0
    %557 = vmatprep.mubr.f32.mxu0 0.0
    %558 = vmatmul.mubr.f32.gmra.mrb[0].mxu0 %v398
    %v559 = vpop.f32.mrb[0].mxu0
    %v560 = vadd.f32 0.0, %v559
    %v561 = vpop.f32.mrb[0].mxu0
    %562 = vmatprep.mubr.f32.mxu0 0.0
    %563 = vmatmul.mubr.f32.gmra.mrb[0].mxu0 %v401
    %v564 = vpop.f32.mrb[0].mxu0
    %v565 = vadd.f32 0.0, %v564
    %v566 = vpop.f32.mrb[0].mxu0
    %567 = vmatprep.mubr.f32.mxu0 0.0
    %568 = vmatmul.mubr.f32.gmra.mrb[0].mxu0 %v404
    %v569 = vpop.f32.mrb[0].mxu0
    %v570 = vadd.f32 0.0, %v569
    %v571 = vpop.f32.mrb[0].mxu0
    %572 = vmatprep.mubr.f32.mxu0 0.0
    %573 = vmatmul.mubr.f32.gmra.mrb[0].mxu0 %v407
    %v574 = vpop.f32.mrb[0].mxu0
    %v575 = vadd.f32 0.0, %v574
    %v576 = vpop.f32.mrb[0].mxu0
    %577 = vmatprep.mubr.f32.mxu0 0.0
    %578 = vmatmul.mubr.f32.gmra.mrb[0].mxu0 %v410
    %v579 = vpop.f32.mrb[0].mxu0
    %v580 = vadd.f32 0.0, %v579
    %v581 = vpop.f32.mrb[0].mxu0
    %582 = vmatprep.mubr.f32.mxu0 0.0
    %583 = vmatmul.mubr.f32.gmra.mrb[0].mxu0 %v413
    %v584 = vpop.f32.mrb[0].mxu0
    %v585 = vadd.f32 0.0, %v584
    %v586 = vpop.f32.mrb[0].mxu0
    %587 = vmatprep.mubr.f32.mxu0 0.0
    %588 = vmatmul.mubr.f32.gmra.mrb[0].mxu0 %v416
    %v589 = vpop.f32.mrb[0].mxu0
    %v590 = vadd.f32 0.0, %v589
    %v591 = vpop.f32.mrb[0].mxu0
    %592 = vmatprep.mubr.f32.mxu0 0.0
    %593 = vmatmul.mubr.f32.gmra.mrb[0].mxu0 %v419
    %v594 = vpop.f32.mrb[0].mxu0
    %v595 = vadd.f32 0.0, %v594
    %v596 = vpop.f32.mrb[0].mxu0
    %597 = vmatprep.mubr.f32.mxu0 0.0
    %598 = vmatmul.mubr.f32.gmra.mrb[0].mxu0 %v422
    %v599 = vpop.f32.mrb[0].mxu0
    %v600 = vadd.f32 0.0, %v599
    %v601 = vpop.f32.mrb[0].mxu0
    %602 = vmatprep.mubr.f32.mxu0 0.0
    %603 = vmatmul.mubr.f32.gmra.mrb[0].mxu0 %v425
    %v604 = vpop.f32.mrb[0].mxu0
    %v605 = vadd.f32 0.0, %v604
    %v606 = vpop.f32.mrb[0].mxu0
    %607 = vmatprep.mubr.f32.mxu0 0.0
    %608 = vmatmul.mubr.f32.gmra.mrb[0].mxu0 %v428
    %v609 = vpop.f32.mrb[0].mxu0
    %v610 = vadd.f32 0.0, %v609
    %v611 = vpop.f32.mrb[0].mxu0
    %612 = vmatprep.mubr.f32.mxu0 0.0
    %613 = vmatmul.mubr.f32.gmra.mrb[0].mxu0 %v431
    %v614 = vpop.f32.mrb[0].mxu0
    %v615 = vadd.f32 0.0, %v614
    %v616 = vpop.f32.mrb[0].mxu0
    %617 = vmatprep.mubr.f32.mxu0 0.0
    %618 = vmatmul.mubr.f32.gmra.mrb[0].mxu0 %v434
    %v619 = vpop.f32.mrb[0].mxu0
    %v620 = vadd.f32 0.0, %v619
    %v621 = vpop.f32.mrb[0].mxu0
    %622 = vmatprep.mubr.f32.mxu0 0.0
    %623 = vmatmul.mubr.f32.gmra.mrb[0].mxu0 %v437
    %v624 = vpop.f32.mrb[0].mxu0
    %v625 = vadd.f32 0.0, %v624
    %v626 = vpop.f32.mrb[0].mxu0
    %627 = vmatprep.mubr.f32.mxu0 0.0
    %628 = vmatmul.mubr.f32.gmra.mrb[0].mxu0 %v440
    %v629 = vpop.f32.mrb[0].mxu0
    %v630 = vadd.f32 0.0, %v629
    %v631 = vpop.f32.mrb[0].mxu0
    %632 = vmatprep.mubr.f32.mxu0 0.0
    %633 = vmatmul.mubr.f32.gmra.mrb[0].mxu0 %v443
    %v634 = vpop.f32.mrb[0].mxu0
    %v635 = vadd.f32 0.0, %v634
    %v636 = vpop.f32.mrb[0].mxu0
    %637 = vdwg.mxu0
    %v639 = vsel %vm396, %v156, 0
    %v642 = vsel %vm396, %v157, 0
    %v645 = vsel %vm396, %v158, 0
    %v648 = vsel %vm396, %v159, 0
    %v651 = vsel %vm396, %v160, 0
    %v654 = vsel %vm396, %v161, 0
    %v657 = vsel %vm396, %v162, 0
    %v660 = vsel %vm396, %v163, 0
    %v663 = vsel %vm396, %v164, 0
    %v666 = vsel %vm396, %v165, 0
    %v669 = vsel %vm396, %v166, 0
    %v672 = vsel %vm396, %v167, 0
    %v675 = vsel %vm396, %v168, 0
    %v678 = vsel %vm396, %v169, 0
    %v681 = vsel %vm396, %v170, 0
    %v684 = vsel %vm396, %v171, 0
    %v687 = vsel %vm396, %v284, 0
    %v690 = vsel %vm396, %v285, 0
    %v693 = vsel %vm396, %v286, 0
    %v696 = vsel %vm396, %v287, 0
    %v699 = vsel %vm396, %v288, 0
    %v702 = vsel %vm396, %v289, 0
    %v705 = vsel %vm396, %v290, 0
    %v708 = vsel %vm396, %v291, 0
    %v711 = vsel %vm396, %v292, 0
    %v714 = vsel %vm396, %v293, 0
    %v717 = vsel %vm396, %v294, 0
    %v720 = vsel %vm396, %v295, 0
    %v723 = vsel %vm396, %v296, 0
    %v726 = vsel %vm396, %v297, 0
    %v729 = vsel %vm396, %v298, 0
    %v732 = vsel %vm396, %v299, 0
    %734 = vmatprep.subr.mxu0 0.0
    %735 = vmatpush1.xpose.msra.mxu0 %v687
    %736 = vmatprep.subr.mxu0 0.0
    %737 = vmatpush1.xpose.msra.mxu0 %v690
    %738 = vmatprep.subr.mxu0 0.0
    %739 = vmatpush1.xpose.msra.mxu0 %v693
    %740 = vmatprep.subr.mxu0 0.0
    %741 = vmatpush1.xpose.msra.mxu0 %v696
    %742 = vmatprep.subr.mxu0 0.0
    %743 = vmatpush1.xpose.msra.mxu0 %v699
    %744 = vmatprep.subr.mxu0 0.0
    %745 = vmatpush1.xpose.msra.mxu0 %v702
    %746 = vmatprep.subr.mxu0 0.0
    %747 = vmatpush1.xpose.msra.mxu0 %v705
    %748 = vmatprep.subr.mxu0 0.0
    %749 = vmatpush1.xpose.msra.mxu0 %v708
    %750 = vmatprep.subr.mxu0 0.0
    %751 = vmatpush1.xpose.msra.mxu0 %v711
    %752 = vmatprep.subr.mxu0 0.0
    %753 = vmatpush1.xpose.msra.mxu0 %v714
    %754 = vmatprep.subr.mxu0 0.0
    %755 = vmatpush1.xpose.msra.mxu0 %v717
    %756 = vmatprep.subr.mxu0 0.0
    %757 = vmatpush1.xpose.msra.mxu0 %v720
    %758 = vmatprep.subr.mxu0 0.0
    %759 = vmatpush1.xpose.msra.mxu0 %v723
    %760 = vmatprep.subr.mxu0 0.0
    %761 = vmatpush1.xpose.msra.mxu0 %v726
    %762 = vmatprep.subr.mxu0 0.0
    %763 = vmatpush1.xpose.msra.mxu0 %v729
    %764 = vmatprep.subr.mxu0 0.0
    %765 = vmatpush1.xpose.msra.mxu0 %v732
    %766 = vmatprep.subr.mxu0 0.0
    %767 = vmatpush1.xpose.msra.mxu0 0.0
    %768 = vmatprep.subr.mxu0 0.0
    %769 = vmatpush1.xpose.msra.mxu0 0.0
    %770 = vmatprep.subr.mxu0 0.0
    %771 = vmatpush1.xpose.msra.mxu0 0.0
    %772 = vmatprep.subr.mxu0 0.0
    %773 = vmatpush1.xpose.msra.mxu0 0.0
    %774 = vmatprep.subr.mxu0 0.0
    %775 = vmatpush1.xpose.msra.mxu0 0.0
    %776 = vmatprep.subr.mxu0 0.0
    %777 = vmatpush1.xpose.msra.mxu0 0.0
    %778 = vmatprep.subr.mxu0 0.0
    %779 = vmatpush1.xpose.msra.mxu0 0.0
    %780 = vmatprep.subr.mxu0 0.0
    %781 = vmatpush1.xpose.msra.mxu0 0.0
    %782 = vmatprep.subr.mxu0 0.0
    %783 = vmatpush1.xpose.msra.mxu0 0.0
    %784 = vmatprep.subr.mxu0 0.0
    %785 = vmatpush1.xpose.msra.mxu0 0.0
    %786 = vmatprep.subr.mxu0 0.0
    %787 = vmatpush1.xpose.msra.mxu0 0.0
    %788 = vmatprep.subr.mxu0 0.0
    %789 = vmatpush1.xpose.msra.mxu0 0.0
    %790 = vmatprep.subr.mxu0 0.0
    %791 = vmatpush1.xpose.msra.mxu0 0.0
    %792 = vmatprep.subr.mxu0 0.0
    %793 = vmatpush1.xpose.msra.mxu0 0.0
    %794 = vmatprep.subr.mxu0 0.0
    %795 = vmatpush1.xpose.msra.mxu0 0.0
    %796 = vmatprep.subr.mxu0 0.0
    %797 = vmatpush1.xpose.msra.mxu0 0.0
    %798 = vmatprep.mubr.f32.mxu0 0.0
    %799 = vmatmul.mubr.f32.gmra.mrb[0].mxu0 %v639
    %v800 = vpop.f32.mrb[0].mxu0
    %v801 = vadd.f32 0.0, %v800
    %v802 = vpop.f32.mrb[0].mxu0
    %803 = vmatprep.mubr.f32.mxu0 0.0
    %804 = vmatmul.mubr.f32.gmra.mrb[0].mxu0 %v642
    %v805 = vpop.f32.mrb[0].mxu0
    %v806 = vadd.f32 0.0, %v805
    %v807 = vpop.f32.mrb[0].mxu0
    %808 = vmatprep.mubr.f32.mxu0 0.0
    %809 = vmatmul.mubr.f32.gmra.mrb[0].mxu0 %v645
    %v810 = vpop.f32.mrb[0].mxu0
    %v811 = vadd.f32 0.0, %v810
    %v812 = vpop.f32.mrb[0].mxu0
    %813 = vmatprep.mubr.f32.mxu0 0.0
    %814 = vmatmul.mubr.f32.gmra.mrb[0].mxu0 %v648
    %v815 = vpop.f32.mrb[0].mxu0
    %v816 = vadd.f32 0.0, %v815
    %v817 = vpop.f32.mrb[0].mxu0
    %818 = vmatprep.mubr.f32.mxu0 0.0
    %819 = vmatmul.mubr.f32.gmra.mrb[0].mxu0 %v651
    %v820 = vpop.f32.mrb[0].mxu0
    %v821 = vadd.f32 0.0, %v820
    %v822 = vpop.f32.mrb[0].mxu0
    %823 = vmatprep.mubr.f32.mxu0 0.0
    %824 = vmatmul.mubr.f32.gmra.mrb[0].mxu0 %v654
    %v825 = vpop.f32.mrb[0].mxu0
    %v826 = vadd.f32 0.0, %v825
    %v827 = vpop.f32.mrb[0].mxu0
    %828 = vmatprep.mubr.f32.mxu0 0.0
    %829 = vmatmul.mubr.f32.gmra.mrb[0].mxu0 %v657
    %v830 = vpop.f32.mrb[0].mxu0
    %v831 = vadd.f32 0.0, %v830
    %v832 = vpop.f32.mrb[0].mxu0
    %833 = vmatprep.mubr.f32.mxu0 0.0
    %834 = vmatmul.mubr.f32.gmra.mrb[0].mxu0 %v660
    %v835 = vpop.f32.mrb[0].mxu0
    %v836 = vadd.f32 0.0, %v835
    %v837 = vpop.f32.mrb[0].mxu0
    %838 = vmatprep.mubr.f32.mxu0 0.0
    %839 = vmatmul.mubr.f32.gmra.mrb[0].mxu0 %v663
    %v840 = vpop.f32.mrb[0].mxu0
    %v841 = vadd.f32 0.0, %v840
    %v842 = vpop.f32.mrb[0].mxu0
    %843 = vmatprep.mubr.f32.mxu0 0.0
    %844 = vmatmul.mubr.f32.gmra.mrb[0].mxu0 %v666
    %v845 = vpop.f32.mrb[0].mxu0
    %v846 = vadd.f32 0.0, %v845
    %v847 = vpop.f32.mrb[0].mxu0
    %848 = vmatprep.mubr.f32.mxu0 0.0
    %849 = vmatmul.mubr.f32.gmra.mrb[0].mxu0 %v669
    %v850 = vpop.f32.mrb[0].mxu0
    %v851 = vadd.f32 0.0, %v850
    %v852 = vpop.f32.mrb[0].mxu0
    %853 = vmatprep.mubr.f32.mxu0 0.0
    %854 = vmatmul.mubr.f32.gmra.mrb[0].mxu0 %v672
    %v855 = vpop.f32.mrb[0].mxu0
    %v856 = vadd.f32 0.0, %v855
    %v857 = vpop.f32.mrb[0].mxu0
    %858 = vmatprep.mubr.f32.mxu0 0.0
    %859 = vmatmul.mubr.f32.gmra.mrb[0].mxu0 %v675
    %v860 = vpop.f32.mrb[0].mxu0
    %v861 = vadd.f32 0.0, %v860
    %v862 = vpop.f32.mrb[0].mxu0
    %863 = vmatprep.mubr.f32.mxu0 0.0
    %864 = vmatmul.mubr.f32.gmra.mrb[0].mxu0 %v678
    %v865 = vpop.f32.mrb[0].mxu0
    %v866 = vadd.f32 0.0, %v865
    %v867 = vpop.f32.mrb[0].mxu0
    %868 = vmatprep.mubr.f32.mxu0 0.0
    %869 = vmatmul.mubr.f32.gmra.mrb[0].mxu0 %v681
    %v870 = vpop.f32.mrb[0].mxu0
    %v871 = vadd.f32 0.0, %v870
    %v872 = vpop.f32.mrb[0].mxu0
    %873 = vmatprep.mubr.f32.mxu0 0.0
    %874 = vmatmul.mubr.f32.gmra.mrb[0].mxu0 %v684
    %v875 = vpop.f32.mrb[0].mxu0
    %v876 = vadd.f32 0.0, %v875
    %v877 = vpop.f32.mrb[0].mxu0
    %878 = vdwg.mxu0
    %v880 = vsel %vm396, %v172, 0
    %v883 = vsel %vm396, %v173, 0
    %v886 = vsel %vm396, %v174, 0
    %v889 = vsel %vm396, %v175, 0
    %v892 = vsel %vm396, %v176, 0
    %v895 = vsel %vm396, %v177, 0
    %v898 = vsel %vm396, %v178, 0
    %v901 = vsel %vm396, %v179, 0
    %v904 = vsel %vm396, %v180, 0
    %v907 = vsel %vm396, %v181, 0
    %v910 = vsel %vm396, %v182, 0
    %v913 = vsel %vm396, %v183, 0
    %v916 = vsel %vm396, %v184, 0
    %v919 = vsel %vm396, %v185, 0
    %v922 = vsel %vm396, %v186, 0
    %v925 = vsel %vm396, %v187, 0
    %v928 = vsel %vm396, %v300, 0
    %v931 = vsel %vm396, %v301, 0
    %v934 = vsel %vm396, %v302, 0
    %v937 = vsel %vm396, %v303, 0
    %v940 = vsel %vm396, %v304, 0
    %v943 = vsel %vm396, %v305, 0
    %v946 = vsel %vm396, %v306, 0
    %v949 = vsel %vm396, %v307, 0
    %v952 = vsel %vm396, %v308, 0
    %v955 = vsel %vm396, %v309, 0
    %v958 = vsel %vm396, %v310, 0
    %v961 = vsel %vm396, %v311, 0
    %v964 = vsel %vm396, %v312, 0
    %v967 = vsel %vm396, %v313, 0
    %v970 = vsel %vm396, %v314, 0
    %v973 = vsel %vm396, %v315, 0
    %975 = vmatprep.subr.mxu0 0.0
    %976 = vmatpush1.xpose.msra.mxu0 %v928
    %977 = vmatprep.subr.mxu0 0.0
    %978 = vmatpush1.xpose.msra.mxu0 %v931
    %979 = vmatprep.subr.mxu0 0.0
    %980 = vmatpush1.xpose.msra.mxu0 %v934
    %981 = vmatprep.subr.mxu0 0.0
    %982 = vmatpush1.xpose.msra.mxu0 %v937
    %983 = vmatprep.subr.mxu0 0.0
    %984 = vmatpush1.xpose.msra.mxu0 %v940
    %985 = vmatprep.subr.mxu0 0.0
    %986 = vmatpush1.xpose.msra.mxu0 %v943
    %987 = vmatprep.subr.mxu0 0.0
    %988 = vmatpush1.xpose.msra.mxu0 %v946
    %989 = vmatprep.subr.mxu0 0.0
    %990 = vmatpush1.xpose.msra.mxu0 %v949
    %991 = vmatprep.subr.mxu0 0.0
    %992 = vmatpush1.xpose.msra.mxu0 %v952
    %993 = vmatprep.subr.mxu0 0.0
    %994 = vmatpush1.xpose.msra.mxu0 %v955
    %995 = vmatprep.subr.mxu0 0.0
    %996 = vmatpush1.xpose.msra.mxu0 %v958
    %997 = vmatprep.subr.mxu0 0.0
    %998 = vmatpush1.xpose.msra.mxu0 %v961
    %999 = vmatprep.subr.mxu0 0.0
    %1000 = vmatpush1.xpose.msra.mxu0 %v964
    %1001 = vmatprep.subr.mxu0 0.0
    %1002 = vmatpush1.xpose.msra.mxu0 %v967
    %1003 = vmatprep.subr.mxu0 0.0
    %1004 = vmatpush1.xpose.msra.mxu0 %v970
    %1005 = vmatprep.subr.mxu0 0.0
    %1006 = vmatpush1.xpose.msra.mxu0 %v973
    %1007 = vmatprep.subr.mxu0 0.0
    %1008 = vmatpush1.xpose.msra.mxu0 0.0
    %1009 = vmatprep.subr.mxu0 0.0
    %1010 = vmatpush1.xpose.msra.mxu0 0.0
    %1011 = vmatprep.subr.mxu0 0.0
    %1012 = vmatpush1.xpose.msra.mxu0 0.0
    %1013 = vmatprep.subr.mxu0 0.0
    %1014 = vmatpush1.xpose.msra.mxu0 0.0
    %1015 = vmatprep.subr.mxu0 0.0
    %1016 = vmatpush1.xpose.msra.mxu0 0.0
    %1017 = vmatprep.subr.mxu0 0.0
    %1018 = vmatpush1.xpose.msra.mxu0 0.0
    %1019 = vmatprep.subr.mxu0 0.0
    %1020 = vmatpush1.xpose.msra.mxu0 0.0
    %1021 = vmatprep.subr.mxu0 0.0
    %1022 = vmatpush1.xpose.msra.mxu0 0.0
    %1023 = vmatprep.subr.mxu0 0.0
    %1024 = vmatpush1.xpose.msra.mxu0 0.0
    %1025 = vmatprep.subr.mxu0 0.0
    %1026 = vmatpush1.xpose.msra.mxu0 0.0
    %1027 = vmatprep.subr.mxu0 0.0
    %1028 = vmatpush1.xpose.msra.mxu0 0.0
    %1029 = vmatprep.subr.mxu0 0.0
    %1030 = vmatpush1.xpose.msra.mxu0 0.0
    %1031 = vmatprep.subr.mxu0 0.0
    %1032 = vmatpush1.xpose.msra.mxu0 0.0
    %1033 = vmatprep.subr.mxu0 0.0
    %1034 = vmatpush1.xpose.msra.mxu0 0.0
    %1035 = vmatprep.subr.mxu0 0.0
    %1036 = vmatpush1.xpose.msra.mxu0 0.0
    %1037 = vmatprep.subr.mxu0 0.0
    %1038 = vmatpush1.xpose.msra.mxu0 0.0
    %1039 = vmatprep.mubr.f32.mxu0 0.0
    %1040 = vmatmul.mubr.f32.gmra.mrb[0].mxu0 %v880
    %v1041 = vpop.f32.mrb[0].mxu0
    %v1042 = vadd.f32 0.0, %v1041
    %v1043 = vpop.f32.mrb[0].mxu0
    %1044 = vmatprep.mubr.f32.mxu0 0.0
    %1045 = vmatmul.mubr.f32.gmra.mrb[0].mxu0 %v883
    %v1046 = vpop.f32.mrb[0].mxu0
    %v1047 = vadd.f32 0.0, %v1046
    %v1048 = vpop.f32.mrb[0].mxu0
    %1049 = vmatprep.mubr.f32.mxu0 0.0
    %1050 = vmatmul.mubr.f32.gmra.mrb[0].mxu0 %v886
    %v1051 = vpop.f32.mrb[0].mxu0
    %v1052 = vadd.f32 0.0, %v1051
    %v1053 = vpop.f32.mrb[0].mxu0
    %1054 = vmatprep.mubr.f32.mxu0 0.0
    %1055 = vmatmul.mubr.f32.gmra.mrb[0].mxu0 %v889
    %v1056 = vpop.f32.mrb[0].mxu0
    %v1057 = vadd.f32 0.0, %v1056
    %v1058 = vpop.f32.mrb[0].mxu0
    %1059 = vmatprep.mubr.f32.mxu0 0.0
    %1060 = vmatmul.mubr.f32.gmra.mrb[0].mxu0 %v892
    %v1061 = vpop.f32.mrb[0].mxu0
    %v1062 = vadd.f32 0.0, %v1061
    %v1063 = vpop.f32.mrb[0].mxu0
    %1064 = vmatprep.mubr.f32.mxu0 0.0
    %1065 = vmatmul.mubr.f32.gmra.mrb[0].mxu0 %v895
    %v1066 = vpop.f32.mrb[0].mxu0
    %v1067 = vadd.f32 0.0, %v1066
    %v1068 = vpop.f32.mrb[0].mxu0
    %1069 = vmatprep.mubr.f32.mxu0 0.0
    %1070 = vmatmul.mubr.f32.gmra.mrb[0].mxu0 %v898
    %v1071 = vpop.f32.mrb[0].mxu0
    %v1072 = vadd.f32 0.0, %v1071
    %v1073 = vpop.f32.mrb[0].mxu0
    %1074 = vmatprep.mubr.f32.mxu0 0.0
    %1075 = vmatmul.mubr.f32.gmra.mrb[0].mxu0 %v901
    %v1076 = vpop.f32.mrb[0].mxu0
    %v1077 = vadd.f32 0.0, %v1076
    %v1078 = vpop.f32.mrb[0].mxu0
    %1079 = vmatprep.mubr.f32.mxu0 0.0
    %1080 = vmatmul.mubr.f32.gmra.mrb[0].mxu0 %v904
    %v1081 = vpop.f32.mrb[0].mxu0
    %v1082 = vadd.f32 0.0, %v1081
    %v1083 = vpop.f32.mrb[0].mxu0
    %1084 = vmatprep.mubr.f32.mxu0 0.0
    %1085 = vmatmul.mubr.f32.gmra.mrb[0].mxu0 %v907
    %v1086 = vpop.f32.mrb[0].mxu0
    %v1087 = vadd.f32 0.0, %v1086
    %v1088 = vpop.f32.mrb[0].mxu0
    %1089 = vmatprep.mubr.f32.mxu0 0.0
    %1090 = vmatmul.mubr.f32.gmra.mrb[0].mxu0 %v910
    %v1091 = vpop.f32.mrb[0].mxu0
    %v1092 = vadd.f32 0.0, %v1091
    %v1093 = vpop.f32.mrb[0].mxu0
    %1094 = vmatprep.mubr.f32.mxu0 0.0
    %1095 = vmatmul.mubr.f32.gmra.mrb[0].mxu0 %v913
    %v1096 = vpop.f32.mrb[0].mxu0
    %v1097 = vadd.f32 0.0, %v1096
    %v1098 = vpop.f32.mrb[0].mxu0
    %1099 = vmatprep.mubr.f32.mxu0 0.0
    %1100 = vmatmul.mubr.f32.gmra.mrb[0].mxu0 %v916
    %v1101 = vpop.f32.mrb[0].mxu0
    %v1102 = vadd.f32 0.0, %v1101
    %v1103 = vpop.f32.mrb[0].mxu0
    %1104 = vmatprep.mubr.f32.mxu0 0.0
    %1105 = vmatmul.mubr.f32.gmra.mrb[0].mxu0 %v919
    %v1106 = vpop.f32.mrb[0].mxu0
    %v1107 = vadd.f32 0.0, %v1106
    %v1108 = vpop.f32.mrb[0].mxu0
    %1109 = vmatprep.mubr.f32.mxu0 0.0
    %1110 = vmatmul.mubr.f32.gmra.mrb[0].mxu0 %v922
    %v1111 = vpop.f32.mrb[0].mxu0
    %v1112 = vadd.f32 0.0, %v1111
    %v1113 = vpop.f32.mrb[0].mxu0
    %1114 = vmatprep.mubr.f32.mxu0 0.0
    %1115 = vmatmul.mubr.f32.gmra.mrb[0].mxu0 %v925
    %v1116 = vpop.f32.mrb[0].mxu0
    %v1117 = vadd.f32 0.0, %v1116
    %v1118 = vpop.f32.mrb[0].mxu0
    %1119 = vdwg.mxu0
    %v1121 = vsel %vm396, %v188, 0
    %v1124 = vsel %vm396, %v189, 0
    %v1127 = vsel %vm396, %v190, 0
    %v1130 = vsel %vm396, %v191, 0
    %v1133 = vsel %vm396, %v192, 0
    %v1136 = vsel %vm396, %v193, 0
    %v1139 = vsel %vm396, %v194, 0
    %v1142 = vsel %vm396, %v195, 0
    %v1145 = vsel %vm396, %v196, 0
    %v1148 = vsel %vm396, %v197, 0
    %v1151 = vsel %vm396, %v198, 0
    %v1154 = vsel %vm396, %v199, 0
    %v1157 = vsel %vm396, %v200, 0
    %v1160 = vsel %vm396, %v201, 0
    %v1163 = vsel %vm396, %v202, 0
    %v1166 = vsel %vm396, %v203, 0
    %v1169 = vsel %vm396, %v316, 0
    %v1172 = vsel %vm396, %v317, 0
    %v1175 = vsel %vm396, %v318, 0
    %v1178 = vsel %vm396, %v319, 0
    %v1181 = vsel %vm396, %v320, 0
    %v1184 = vsel %vm396, %v321, 0
    %v1187 = vsel %vm396, %v322, 0
    %v1190 = vsel %vm396, %v323, 0
    %v1193 = vsel %vm396, %v324, 0
    %v1196 = vsel %vm396, %v325, 0
    %v1199 = vsel %vm396, %v326, 0
    %v1202 = vsel %vm396, %v327, 0
    %v1205 = vsel %vm396, %v328, 0
    %v1208 = vsel %vm396, %v329, 0
    %v1211 = vsel %vm396, %v330, 0
    %v1214 = vsel %vm396, %v331, 0
    %1216 = vmatprep.subr.mxu0 0.0
    %1217 = vmatpush1.xpose.msra.mxu0 %v1169
    %1218 = vmatprep.subr.mxu0 0.0
    %1219 = vmatpush1.xpose.msra.mxu0 %v1172
    %1220 = vmatprep.subr.mxu0 0.0
    %1221 = vmatpush1.xpose.msra.mxu0 %v1175
    %1222 = vmatprep.subr.mxu0 0.0
    %1223 = vmatpush1.xpose.msra.mxu0 %v1178
    %1224 = vmatprep.subr.mxu0 0.0
    %1225 = vmatpush1.xpose.msra.mxu0 %v1181
    %1226 = vmatprep.subr.mxu0 0.0
    %1227 = vmatpush1.xpose.msra.mxu0 %v1184
    %1228 = vmatprep.subr.mxu0 0.0
    %1229 = vmatpush1.xpose.msra.mxu0 %v1187
    %1230 = vmatprep.subr.mxu0 0.0
    %1231 = vmatpush1.xpose.msra.mxu0 %v1190
    %1232 = vmatprep.subr.mxu0 0.0
    %1233 = vmatpush1.xpose.msra.mxu0 %v1193
    %1234 = vmatprep.subr.mxu0 0.0
    %1235 = vmatpush1.xpose.msra.mxu0 %v1196
    %1236 = vmatprep.subr.mxu0 0.0
    %1237 = vmatpush1.xpose.msra.mxu0 %v1199
    %1238 = vmatprep.subr.mxu0 0.0
    %1239 = vmatpush1.xpose.msra.mxu0 %v1202
    %1240 = vmatprep.subr.mxu0 0.0
    %1241 = vmatpush1.xpose.msra.mxu0 %v1205
    %1242 = vmatprep.subr.mxu0 0.0
    %1243 = vmatpush1.xpose.msra.mxu0 %v1208
    %1244 = vmatprep.subr.mxu0 0.0
    %1245 = vmatpush1.xpose.msra.mxu0 %v1211
    %1246 = vmatprep.subr.mxu0 0.0
    %1247 = vmatpush1.xpose.msra.mxu0 %v1214
    %1248 = vmatprep.subr.mxu0 0.0
    %1249 = vmatpush1.xpose.msra.mxu0 0.0
    %1250 = vmatprep.subr.mxu0 0.0
    %1251 = vmatpush1.xpose.msra.mxu0 0.0
    %1252 = vmatprep.subr.mxu0 0.0
    %1253 = vmatpush1.xpose.msra.mxu0 0.0
    %1254 = vmatprep.subr.mxu0 0.0
    %1255 = vmatpush1.xpose.msra.mxu0 0.0
    %1256 = vmatprep.subr.mxu0 0.0
    %1257 = vmatpush1.xpose.msra.mxu0 0.0
    %1258 = vmatprep.subr.mxu0 0.0
    %1259 = vmatpush1.xpose.msra.mxu0 0.0
    %1260 = vmatprep.subr.mxu0 0.0
    %1261 = vmatpush1.xpose.msra.mxu0 0.0
    %1262 = vmatprep.subr.mxu0 0.0
    %1263 = vmatpush1.xpose.msra.mxu0 0.0
    %1264 = vmatprep.subr.mxu0 0.0
    %1265 = vmatpush1.xpose.msra.mxu0 0.0
    %1266 = vmatprep.subr.mxu0 0.0
    %1267 = vmatpush1.xpose.msra.mxu0 0.0
    %1268 = vmatprep.subr.mxu0 0.0
    %1269 = vmatpush1.xpose.msra.mxu0 0.0
    %1270 = vmatprep.subr.mxu0 0.0
    %1271 = vmatpush1.xpose.msra.mxu0 0.0
    %1272 = vmatprep.subr.mxu0 0.0
    %1273 = vmatpush1.xpose.msra.mxu0 0.0
    %1274 = vmatprep.subr.mxu0 0.0
    %1275 = vmatpush1.xpose.msra.mxu0 0.0
    %1276 = vmatprep.subr.mxu0 0.0
    %1277 = vmatpush1.xpose.msra.mxu0 0.0
    %1278 = vmatprep.subr.mxu0 0.0
    %1279 = vmatpush1.xpose.msra.mxu0 0.0
    %1280 = vmatprep.mubr.f32.mxu0 0.0
    %1281 = vmatmul.mubr.f32.gmra.mrb[0].mxu0 %v1121
    %v1282 = vpop.f32.mrb[0].mxu0
    %v1283 = vadd.f32 0.0, %v1282
    %v1284 = vpop.f32.mrb[0].mxu0
    %1285 = vmatprep.mubr.f32.mxu0 0.0
    %1286 = vmatmul.mubr.f32.gmra.mrb[0].mxu0 %v1124
    %v1287 = vpop.f32.mrb[0].mxu0
    %v1288 = vadd.f32 0.0, %v1287
    %v1289 = vpop.f32.mrb[0].mxu0
    %1290 = vmatprep.mubr.f32.mxu0 0.0
    %1291 = vmatmul.mubr.f32.gmra.mrb[0].mxu0 %v1127
    %v1292 = vpop.f32.mrb[0].mxu0
    %v1293 = vadd.f32 0.0, %v1292
    %v1294 = vpop.f32.mrb[0].mxu0
    %1295 = vmatprep.mubr.f32.mxu0 0.0
    %1296 = vmatmul.mubr.f32.gmra.mrb[0].mxu0 %v1130
    %v1297 = vpop.f32.mrb[0].mxu0
    %v1298 = vadd.f32 0.0, %v1297
    %v1299 = vpop.f32.mrb[0].mxu0
    %1300 = vmatprep.mubr.f32.mxu0 0.0
    %1301 = vmatmul.mubr.f32.gmra.mrb[0].mxu0 %v1133
    %v1302 = vpop.f32.mrb[0].mxu0
    %v1303 = vadd.f32 0.0, %v1302
    %v1304 = vpop.f32.mrb[0].mxu0
    %1305 = vmatprep.mubr.f32.mxu0 0.0
    %1306 = vmatmul.mubr.f32.gmra.mrb[0].mxu0 %v1136
    %v1307 = vpop.f32.mrb[0].mxu0
    %v1308 = vadd.f32 0.0, %v1307
    %v1309 = vpop.f32.mrb[0].mxu0
    %1310 = vmatprep.mubr.f32.mxu0 0.0
    %1311 = vmatmul.mubr.f32.gmra.mrb[0].mxu0 %v1139
    %v1312 = vpop.f32.mrb[0].mxu0
    %v1313 = vadd.f32 0.0, %v1312
    %v1314 = vpop.f32.mrb[0].mxu0
    %1315 = vmatprep.mubr.f32.mxu0 0.0
    %1316 = vmatmul.mubr.f32.gmra.mrb[0].mxu0 %v1142
    %v1317 = vpop.f32.mrb[0].mxu0
    %v1318 = vadd.f32 0.0, %v1317
    %v1319 = vpop.f32.mrb[0].mxu0
    %1320 = vmatprep.mubr.f32.mxu0 0.0
    %1321 = vmatmul.mubr.f32.gmra.mrb[0].mxu0 %v1145
    %v1322 = vpop.f32.mrb[0].mxu0
    %v1323 = vadd.f32 0.0, %v1322
    %v1324 = vpop.f32.mrb[0].mxu0
    %1325 = vmatprep.mubr.f32.mxu0 0.0
    %1326 = vmatmul.mubr.f32.gmra.mrb[0].mxu0 %v1148
    %v1327 = vpop.f32.mrb[0].mxu0
    %v1328 = vadd.f32 0.0, %v1327
    %v1329 = vpop.f32.mrb[0].mxu0
    %1330 = vmatprep.mubr.f32.mxu0 0.0
    %1331 = vmatmul.mubr.f32.gmra.mrb[0].mxu0 %v1151
    %v1332 = vpop.f32.mrb[0].mxu0
    %v1333 = vadd.f32 0.0, %v1332
    %v1334 = vpop.f32.mrb[0].mxu0
    %1335 = vmatprep.mubr.f32.mxu0 0.0
    %1336 = vmatmul.mubr.f32.gmra.mrb[0].mxu0 %v1154
    %v1337 = vpop.f32.mrb[0].mxu0
    %v1338 = vadd.f32 0.0, %v1337
    %v1339 = vpop.f32.mrb[0].mxu0
    %1340 = vmatprep.mubr.f32.mxu0 0.0
    %1341 = vmatmul.mubr.f32.gmra.mrb[0].mxu0 %v1157
    %v1342 = vpop.f32.mrb[0].mxu0
    %v1343 = vadd.f32 0.0, %v1342
    %v1344 = vpop.f32.mrb[0].mxu0
    %1345 = vmatprep.mubr.f32.mxu0 0.0
    %1346 = vmatmul.mubr.f32.gmra.mrb[0].mxu0 %v1160
    %v1347 = vpop.f32.mrb[0].mxu0
    %v1348 = vadd.f32 0.0, %v1347
    %v1349 = vpop.f32.mrb[0].mxu0
    %1350 = vmatprep.mubr.f32.mxu0 0.0
    %1351 = vmatmul.mubr.f32.gmra.mrb[0].mxu0 %v1163
    %v1352 = vpop.f32.mrb[0].mxu0
    %v1353 = vadd.f32 0.0, %v1352
    %v1354 = vpop.f32.mrb[0].mxu0
    %1355 = vmatprep.mubr.f32.mxu0 0.0
    %1356 = vmatmul.mubr.f32.gmra.mrb[0].mxu0 %v1166
    %v1357 = vpop.f32.mrb[0].mxu0
    %v1358 = vadd.f32 0.0, %v1357
    %v1359 = vpop.f32.mrb[0].mxu0
    %1360 = vdwg.mxu0
    %v1362 = vsel %vm396, %v204, 0
    %v1365 = vsel %vm396, %v205, 0
    %v1368 = vsel %vm396, %v206, 0
    %v1371 = vsel %vm396, %v207, 0
    %v1374 = vsel %vm396, %v208, 0
    %v1377 = vsel %vm396, %v209, 0
    %v1380 = vsel %vm396, %v210, 0
    %v1383 = vsel %vm396, %v211, 0
    %v1386 = vsel %vm396, %v212, 0
    %v1389 = vsel %vm396, %v213, 0
    %v1392 = vsel %vm396, %v214, 0
    %v1395 = vsel %vm396, %v215, 0
    %v1398 = vsel %vm396, %v216, 0
    %v1401 = vsel %vm396, %v217, 0
    %v1404 = vsel %vm396, %v218, 0
    %v1407 = vsel %vm396, %v219, 0
    %v1410 = vsel %vm396, %v332, 0
    %v1413 = vsel %vm396, %v333, 0
    %v1416 = vsel %vm396, %v334, 0
    %v1419 = vsel %vm396, %v335, 0
    %v1422 = vsel %vm396, %v336, 0
    %v1425 = vsel %vm396, %v337, 0
    %v1428 = vsel %vm396, %v338, 0
    %v1431 = vsel %vm396, %v339, 0
    %v1434 = vsel %vm396, %v340, 0
    %v1437 = vsel %vm396, %v341, 0
    %v1440 = vsel %vm396, %v342, 0
    %v1443 = vsel %vm396, %v343, 0
    %v1446 = vsel %vm396, %v344, 0
    %v1449 = vsel %vm396, %v345, 0
    %v1452 = vsel %vm396, %v346, 0
    %v1455 = vsel %vm396, %v347, 0
    %1457 = vmatprep.subr.mxu0 0.0
    %1458 = vmatpush1.xpose.msra.mxu0 %v1410
    %1459 = vmatprep.subr.mxu0 0.0
    %1460 = vmatpush1.xpose.msra.mxu0 %v1413
    %1461 = vmatprep.subr.mxu0 0.0
    %1462 = vmatpush1.xpose.msra.mxu0 %v1416
    %1463 = vmatprep.subr.mxu0 0.0
    %1464 = vmatpush1.xpose.msra.mxu0 %v1419
    %1465 = vmatprep.subr.mxu0 0.0
    %1466 = vmatpush1.xpose.msra.mxu0 %v1422
    %1467 = vmatprep.subr.mxu0 0.0
    %1468 = vmatpush1.xpose.msra.mxu0 %v1425
    %1469 = vmatprep.subr.mxu0 0.0
    %1470 = vmatpush1.xpose.msra.mxu0 %v1428
    %1471 = vmatprep.subr.mxu0 0.0
    %1472 = vmatpush1.xpose.msra.mxu0 %v1431
    %1473 = vmatprep.subr.mxu0 0.0
    %1474 = vmatpush1.xpose.msra.mxu0 %v1434
    %1475 = vmatprep.subr.mxu0 0.0
    %1476 = vmatpush1.xpose.msra.mxu0 %v1437
    %1477 = vmatprep.subr.mxu0 0.0
    %1478 = vmatpush1.xpose.msra.mxu0 %v1440
    %1479 = vmatprep.subr.mxu0 0.0
    %1480 = vmatpush1.xpose.msra.mxu0 %v1443
    %1481 = vmatprep.subr.mxu0 0.0
    %1482 = vmatpush1.xpose.msra.mxu0 %v1446
    %1483 = vmatprep.subr.mxu0 0.0
    %1484 = vmatpush1.xpose.msra.mxu0 %v1449
    %1485 = vmatprep.subr.mxu0 0.0
    %1486 = vmatpush1.xpose.msra.mxu0 %v1452
    %1487 = vmatprep.subr.mxu0 0.0
    %1488 = vmatpush1.xpose.msra.mxu0 %v1455
    %1489 = vmatprep.subr.mxu0 0.0
    %1490 = vmatpush1.xpose.msra.mxu0 0.0
    %1491 = vmatprep.subr.mxu0 0.0
    %1492 = vmatpush1.xpose.msra.mxu0 0.0
    %1493 = vmatprep.subr.mxu0 0.0
    %1494 = vmatpush1.xpose.msra.mxu0 0.0
    %1495 = vmatprep.subr.mxu0 0.0
    %1496 = vmatpush1.xpose.msra.mxu0 0.0
    %1497 = vmatprep.subr.mxu0 0.0
    %1498 = vmatpush1.xpose.msra.mxu0 0.0
    %1499 = vmatprep.subr.mxu0 0.0
    %1500 = vmatpush1.xpose.msra.mxu0 0.0
    %1501 = vmatprep.subr.mxu0 0.0
    %1502 = vmatpush1.xpose.msra.mxu0 0.0
    %1503 = vmatprep.subr.mxu0 0.0
    %1504 = vmatpush1.xpose.msra.mxu0 0.0
    %1505 = vmatprep.subr.mxu0 0.0
    %1506 = vmatpush1.xpose.msra.mxu0 0.0
    %1507 = vmatprep.subr.mxu0 0.0
    %1508 = vmatpush1.xpose.msra.mxu0 0.0
    %1509 = vmatprep.subr.mxu0 0.0
    %1510 = vmatpush1.xpose.msra.mxu0 0.0
    %1511 = vmatprep.subr.mxu0 0.0
    %1512 = vmatpush1.xpose.msra.mxu0 0.0
    %1513 = vmatprep.subr.mxu0 0.0
    %1514 = vmatpush1.xpose.msra.mxu0 0.0
    %1515 = vmatprep.subr.mxu0 0.0
    %1516 = vmatpush1.xpose.msra.mxu0 0.0
    %1517 = vmatprep.subr.mxu0 0.0
    %1518 = vmatpush1.xpose.msra.mxu0 0.0
    %1519 = vmatprep.subr.mxu0 0.0
    %1520 = vmatpush1.xpose.msra.mxu0 0.0
    %1521 = vmatprep.mubr.f32.mxu0 0.0
    %1522 = vmatmul.mubr.f32.gmra.mrb[0].mxu0 %v1362
    %v1523 = vpop.f32.mrb[0].mxu0
    %v1524 = vadd.f32 0.0, %v1523
    %v1525 = vpop.f32.mrb[0].mxu0
    %1526 = vmatprep.mubr.f32.mxu0 0.0
    %1527 = vmatmul.mubr.f32.gmra.mrb[0].mxu0 %v1365
    %v1528 = vpop.f32.mrb[0].mxu0
    %v1529 = vadd.f32 0.0, %v1528
    %v1530 = vpop.f32.mrb[0].mxu0
    %1531 = vmatprep.mubr.f32.mxu0 0.0
    %1532 = vmatmul.mubr.f32.gmra.mrb[0].mxu0 %v1368
    %v1533 = vpop.f32.mrb[0].mxu0
    %v1534 = vadd.f32 0.0, %v1533
    %v1535 = vpop.f32.mrb[0].mxu0
    %1536 = vmatprep.mubr.f32.mxu0 0.0
    %1537 = vmatmul.mubr.f32.gmra.mrb[0].mxu0 %v1371
    %v1538 = vpop.f32.mrb[0].mxu0
    %v1539 = vadd.f32 0.0, %v1538
    %v1540 = vpop.f32.mrb[0].mxu0
    %1541 = vmatprep.mubr.f32.mxu0 0.0
    %1542 = vmatmul.mubr.f32.gmra.mrb[0].mxu0 %v1374
    %v1543 = vpop.f32.mrb[0].mxu0
    %v1544 = vadd.f32 0.0, %v1543
    %v1545 = vpop.f32.mrb[0].mxu0
    %1546 = vmatprep.mubr.f32.mxu0 0.0
    %1547 = vmatmul.mubr.f32.gmra.mrb[0].mxu0 %v1377
    %v1548 = vpop.f32.mrb[0].mxu0
    %v1549 = vadd.f32 0.0, %v1548
    %v1550 = vpop.f32.mrb[0].mxu0
    %1551 = vmatprep.mubr.f32.mxu0 0.0
    %1552 = vmatmul.mubr.f32.gmra.mrb[0].mxu0 %v1380
    %v1553 = vpop.f32.mrb[0].mxu0
    %v1554 = vadd.f32 0.0, %v1553
    %v1555 = vpop.f32.mrb[0].mxu0
    %1556 = vmatprep.mubr.f32.mxu0 0.0
    %1557 = vmatmul.mubr.f32.gmra.mrb[0].mxu0 %v1383
    %v1558 = vpop.f32.mrb[0].mxu0
    %v1559 = vadd.f32 0.0, %v1558
    %v1560 = vpop.f32.mrb[0].mxu0
    %1561 = vmatprep.mubr.f32.mxu0 0.0
    %1562 = vmatmul.mubr.f32.gmra.mrb[0].mxu0 %v1386
    %v1563 = vpop.f32.mrb[0].mxu0
    %v1564 = vadd.f32 0.0, %v1563
    %v1565 = vpop.f32.mrb[0].mxu0
    %1566 = vmatprep.mubr.f32.mxu0 0.0
    %1567 = vmatmul.mubr.f32.gmra.mrb[0].mxu0 %v1389
    %v1568 = vpop.f32.mrb[0].mxu0
    %v1569 = vadd.f32 0.0, %v1568
    %v1570 = vpop.f32.mrb[0].mxu0
    %1571 = vmatprep.mubr.f32.mxu0 0.0
    %1572 = vmatmul.mubr.f32.gmra.mrb[0].mxu0 %v1392
    %v1573 = vpop.f32.mrb[0].mxu0
    %v1574 = vadd.f32 0.0, %v1573
    %v1575 = vpop.f32.mrb[0].mxu0
    %1576 = vmatprep.mubr.f32.mxu0 0.0
    %1577 = vmatmul.mubr.f32.gmra.mrb[0].mxu0 %v1395
    %v1578 = vpop.f32.mrb[0].mxu0
    %v1579 = vadd.f32 0.0, %v1578
    %v1580 = vpop.f32.mrb[0].mxu0
    %1581 = vmatprep.mubr.f32.mxu0 0.0
    %1582 = vmatmul.mubr.f32.gmra.mrb[0].mxu0 %v1398
    %v1583 = vpop.f32.mrb[0].mxu0
    %v1584 = vadd.f32 0.0, %v1583
    %v1585 = vpop.f32.mrb[0].mxu0
    %1586 = vmatprep.mubr.f32.mxu0 0.0
    %1587 = vmatmul.mubr.f32.gmra.mrb[0].mxu0 %v1401
    %v1588 = vpop.f32.mrb[0].mxu0
    %v1589 = vadd.f32 0.0, %v1588
    %v1590 = vpop.f32.mrb[0].mxu0
    %1591 = vmatprep.mubr.f32.mxu0 0.0
    %1592 = vmatmul.mubr.f32.gmra.mrb[0].mxu0 %v1404
    %v1593 = vpop.f32.mrb[0].mxu0
    %v1594 = vadd.f32 0.0, %v1593
    %v1595 = vpop.f32.mrb[0].mxu0
    %1596 = vmatprep.mubr.f32.mxu0 0.0
    %1597 = vmatmul.mubr.f32.gmra.mrb[0].mxu0 %v1407
    %v1598 = vpop.f32.mrb[0].mxu0
    %v1599 = vadd.f32 0.0, %v1598
    %v1600 = vpop.f32.mrb[0].mxu0
    %1601 = vdwg.mxu0
    %v1603 = vsel %vm396, %v220, 0
    %v1606 = vsel %vm396, %v221, 0
    %v1609 = vsel %vm396, %v222, 0
    %v1612 = vsel %vm396, %v223, 0
    %v1615 = vsel %vm396, %v224, 0
    %v1618 = vsel %vm396, %v225, 0
    %v1621 = vsel %vm396, %v226, 0
    %v1624 = vsel %vm396, %v227, 0
    %v1627 = vsel %vm396, %v228, 0
    %v1630 = vsel %vm396, %v229, 0
    %v1633 = vsel %vm396, %v230, 0
    %v1636 = vsel %vm396, %v231, 0
    %v1639 = vsel %vm396, %v232, 0
    %v1642 = vsel %vm396, %v233, 0
    %v1645 = vsel %vm396, %v234, 0
    %v1648 = vsel %vm396, %v235, 0
    %v1651 = vsel %vm396, %v348, 0
    %v1654 = vsel %vm396, %v349, 0
    %v1657 = vsel %vm396, %v350, 0
    %v1660 = vsel %vm396, %v351, 0
    %v1663 = vsel %vm396, %v352, 0
    %v1666 = vsel %vm396, %v353, 0
    %v1669 = vsel %vm396, %v354, 0
    %v1672 = vsel %vm396, %v355, 0
    %v1675 = vsel %vm396, %v356, 0
    %v1678 = vsel %vm396, %v357, 0
    %v1681 = vsel %vm396, %v358, 0
    %v1684 = vsel %vm396, %v359, 0
    %v1687 = vsel %vm396, %v360, 0
    %v1690 = vsel %vm396, %v361, 0
    %v1693 = vsel %vm396, %v362, 0
    %v1696 = vsel %vm396, %v363, 0
    %1698 = vmatprep.subr.mxu0 0.0
    %1699 = vmatpush1.xpose.msra.mxu0 %v1651
    %1700 = vmatprep.subr.mxu0 0.0
    %1701 = vmatpush1.xpose.msra.mxu0 %v1654
    %1702 = vmatprep.subr.mxu0 0.0
    %1703 = vmatpush1.xpose.msra.mxu0 %v1657
    %1704 = vmatprep.subr.mxu0 0.0
    %1705 = vmatpush1.xpose.msra.mxu0 %v1660
    %1706 = vmatprep.subr.mxu0 0.0
    %1707 = vmatpush1.xpose.msra.mxu0 %v1663
    %1708 = vmatprep.subr.mxu0 0.0
    %1709 = vmatpush1.xpose.msra.mxu0 %v1666
    %1710 = vmatprep.subr.mxu0 0.0
    %1711 = vmatpush1.xpose.msra.mxu0 %v1669
    %1712 = vmatprep.subr.mxu0 0.0
    %1713 = vmatpush1.xpose.msra.mxu0 %v1672
    %1714 = vmatprep.subr.mxu0 0.0
    %1715 = vmatpush1.xpose.msra.mxu0 %v1675
    %1716 = vmatprep.subr.mxu0 0.0
    %1717 = vmatpush1.xpose.msra.mxu0 %v1678
    %1718 = vmatprep.subr.mxu0 0.0
    %1719 = vmatpush1.xpose.msra.mxu0 %v1681
    %1720 = vmatprep.subr.mxu0 0.0
    %1721 = vmatpush1.xpose.msra.mxu0 %v1684
    %1722 = vmatprep.subr.mxu0 0.0
    %1723 = vmatpush1.xpose.msra.mxu0 %v1687
    %1724 = vmatprep.subr.mxu0 0.0
    %1725 = vmatpush1.xpose.msra.mxu0 %v1690
    %1726 = vmatprep.subr.mxu0 0.0
    %1727 = vmatpush1.xpose.msra.mxu0 %v1693
    %1728 = vmatprep.subr.mxu0 0.0
    %1729 = vmatpush1.xpose.msra.mxu0 %v1696
    %1730 = vmatprep.subr.mxu0 0.0
    %1731 = vmatpush1.xpose.msra.mxu0 0.0
    %1732 = vmatprep.subr.mxu0 0.0
    %1733 = vmatpush1.xpose.msra.mxu0 0.0
    %1734 = vmatprep.subr.mxu0 0.0
    %1735 = vmatpush1.xpose.msra.mxu0 0.0
    %1736 = vmatprep.subr.mxu0 0.0
    %1737 = vmatpush1.xpose.msra.mxu0 0.0
    %1738 = vmatprep.subr.mxu0 0.0
    %1739 = vmatpush1.xpose.msra.mxu0 0.0
    %1740 = vmatprep.subr.mxu0 0.0
    %1741 = vmatpush1.xpose.msra.mxu0 0.0
    %1742 = vmatprep.subr.mxu0 0.0
    %1743 = vmatpush1.xpose.msra.mxu0 0.0
    %1744 = vmatprep.subr.mxu0 0.0
    %1745 = vmatpush1.xpose.msra.mxu0 0.0
    %1746 = vmatprep.subr.mxu0 0.0
    %1747 = vmatpush1.xpose.msra.mxu0 0.0
    %1748 = vmatprep.subr.mxu0 0.0
    %1749 = vmatpush1.xpose.msra.mxu0 0.0
    %1750 = vmatprep.subr.mxu0 0.0
    %1751 = vmatpush1.xpose.msra.mxu0 0.0
    %1752 = vmatprep.subr.mxu0 0.0
    %1753 = vmatpush1.xpose.msra.mxu0 0.0
    %1754 = vmatprep.subr.mxu0 0.0
    %1755 = vmatpush1.xpose.msra.mxu0 0.0
    %1756 = vmatprep.subr.mxu0 0.0
    %1757 = vmatpush1.xpose.msra.mxu0 0.0
    %1758 = vmatprep.subr.mxu0 0.0
    %1759 = vmatpush1.xpose.msra.mxu0 0.0
    %1760 = vmatprep.subr.mxu0 0.0
    %1761 = vmatpush1.xpose.msra.mxu0 0.0
    %1762 = vmatprep.mubr.f32.mxu0 0.0
    %1763 = vmatmul.mubr.f32.gmra.mrb[0].mxu0 %v1603
    %v1764 = vpop.f32.mrb[0].mxu0
    %v1765 = vadd.f32 0.0, %v1764
    %v1766 = vpop.f32.mrb[0].mxu0
    %1767 = vmatprep.mubr.f32.mxu0 0.0
    %1768 = vmatmul.mubr.f32.gmra.mrb[0].mxu0 %v1606
    %v1769 = vpop.f32.mrb[0].mxu0
    %v1770 = vadd.f32 0.0, %v1769
    %v1771 = vpop.f32.mrb[0].mxu0
    %1772 = vmatprep.mubr.f32.mxu0 0.0
    %1773 = vmatmul.mubr.f32.gmra.mrb[0].mxu0 %v1609
    %v1774 = vpop.f32.mrb[0].mxu0
    %v1775 = vadd.f32 0.0, %v1774
    %v1776 = vpop.f32.mrb[0].mxu0
    %1777 = vmatprep.mubr.f32.mxu0 0.0
    %1778 = vmatmul.mubr.f32.gmra.mrb[0].mxu0 %v1612
    %v1779 = vpop.f32.mrb[0].mxu0
    %v1780 = vadd.f32 0.0, %v1779
    %v1781 = vpop.f32.mrb[0].mxu0
    %1782 = vmatprep.mubr.f32.mxu0 0.0
    %1783 = vmatmul.mubr.f32.gmra.mrb[0].mxu0 %v1615
    %v1784 = vpop.f32.mrb[0].mxu0
    %v1785 = vadd.f32 0.0, %v1784
    %v1786 = vpop.f32.mrb[0].mxu0
    %1787 = vmatprep.mubr.f32.mxu0 0.0
    %1788 = vmatmul.mubr.f32.gmra.mrb[0].mxu0 %v1618
    %v1789 = vpop.f32.mrb[0].mxu0
    %v1790 = vadd.f32 0.0, %v1789
    %v1791 = vpop.f32.mrb[0].mxu0
    %1792 = vmatprep.mubr.f32.mxu0 0.0
    %1793 = vmatmul.mubr.f32.gmra.mrb[0].mxu0 %v1621
    %v1794 = vpop.f32.mrb[0].mxu0
    %v1795 = vadd.f32 0.0, %v1794
    %v1796 = vpop.f32.mrb[0].mxu0
    %1797 = vmatprep.mubr.f32.mxu0 0.0
    %1798 = vmatmul.mubr.f32.gmra.mrb[0].mxu0 %v1624
    %v1799 = vpop.f32.mrb[0].mxu0
    %v1800 = vadd.f32 0.0, %v1799
    %v1801 = vpop.f32.mrb[0].mxu0
    %1802 = vmatprep.mubr.f32.mxu0 0.0
    %1803 = vmatmul.mubr.f32.gmra.mrb[0].mxu0 %v1627
    %v1804 = vpop.f32.mrb[0].mxu0
    %v1805 = vadd.f32 0.0, %v1804
    %v1806 = vpop.f32.mrb[0].mxu0
    %1807 = vmatprep.mubr.f32.mxu0 0.0
    %1808 = vmatmul.mubr.f32.gmra.mrb[0].mxu0 %v1630
    %v1809 = vpop.f32.mrb[0].mxu0
    %v1810 = vadd.f32 0.0, %v1809
    %v1811 = vpop.f32.mrb[0].mxu0
    %1812 = vmatprep.mubr.f32.mxu0 0.0
    %1813 = vmatmul.mubr.f32.gmra.mrb[0].mxu0 %v1633
    %v1814 = vpop.f32.mrb[0].mxu0
    %v1815 = vadd.f32 0.0, %v1814
    %v1816 = vpop.f32.mrb[0].mxu0
    %1817 = vmatprep.mubr.f32.mxu0 0.0
    %1818 = vmatmul.mubr.f32.gmra.mrb[0].mxu0 %v1636
    %v1819 = vpop.f32.mrb[0].mxu0
    %v1820 = vadd.f32 0.0, %v1819
    %v1821 = vpop.f32.mrb[0].mxu0
    %1822 = vmatprep.mubr.f32.mxu0 0.0
    %1823 = vmatmul.mubr.f32.gmra.mrb[0].mxu0 %v1639
    %v1824 = vpop.f32.mrb[0].mxu0
    %v1825 = vadd.f32 0.0, %v1824
    %v1826 = vpop.f32.mrb[0].mxu0
    %1827 = vmatprep.mubr.f32.mxu0 0.0
    %1828 = vmatmul.mubr.f32.gmra.mrb[0].mxu0 %v1642
    %v1829 = vpop.f32.mrb[0].mxu0
    %v1830 = vadd.f32 0.0, %v1829
    %v1831 = vpop.f32.mrb[0].mxu0
    %1832 = vmatprep.mubr.f32.mxu0 0.0
    %1833 = vmatmul.mubr.f32.gmra.mrb[0].mxu0 %v1645
    %v1834 = vpop.f32.mrb[0].mxu0
    %v1835 = vadd.f32 0.0, %v1834
    %v1836 = vpop.f32.mrb[0].mxu0
    %1837 = vmatprep.mubr.f32.mxu0 0.0
    %1838 = vmatmul.mubr.f32.gmra.mrb[0].mxu0 %v1648
    %v1839 = vpop.f32.mrb[0].mxu0
    %v1840 = vadd.f32 0.0, %v1839
    %v1841 = vpop.f32.mrb[0].mxu0
    %1842 = vdwg.mxu0
    %v1844 = vsel %vm396, %v236, 0
    %v1847 = vsel %vm396, %v237, 0
    %v1850 = vsel %vm396, %v238, 0
    %v1853 = vsel %vm396, %v239, 0
    %v1856 = vsel %vm396, %v240, 0
    %v1859 = vsel %vm396, %v241, 0
    %v1862 = vsel %vm396, %v242, 0
    %v1865 = vsel %vm396, %v243, 0
    %v1868 = vsel %vm396, %v244, 0
    %v1871 = vsel %vm396, %v245, 0
    %v1874 = vsel %vm396, %v246, 0
    %v1877 = vsel %vm396, %v247, 0
    %v1880 = vsel %vm396, %v248, 0
    %v1883 = vsel %vm396, %v249, 0
    %v1886 = vsel %vm396, %v250, 0
    %v1889 = vsel %vm396, %v251, 0
    %v1892 = vsel %vm396, %v364, 0
    %v1895 = vsel %vm396, %v365, 0
    %v1898 = vsel %vm396, %v366, 0
    %v1901 = vsel %vm396, %v367, 0
    %v1904 = vsel %vm396, %v368, 0
    %v1907 = vsel %vm396, %v369, 0
    %v1910 = vsel %vm396, %v370, 0
    %v1913 = vsel %vm396, %v371, 0
    %v1916 = vsel %vm396, %v372, 0
    %v1919 = vsel %vm396, %v373, 0
    %v1922 = vsel %vm396, %v374, 0
    %v1925 = vsel %vm396, %v375, 0
    %v1928 = vsel %vm396, %v376, 0
    %v1931 = vsel %vm396, %v377, 0
    %v1934 = vsel %vm396, %v378, 0
    %v1937 = vsel %vm396, %v379, 0
    %1939 = vmatprep.subr.mxu0 0.0
    %1940 = vmatpush1.xpose.msra.mxu0 %v1892
    %1941 = vmatprep.subr.mxu0 0.0
    %1942 = vmatpush1.xpose.msra.mxu0 %v1895
    %1943 = vmatprep.subr.mxu0 0.0
    %1944 = vmatpush1.xpose.msra.mxu0 %v1898
    %1945 = vmatprep.subr.mxu0 0.0
    %1946 = vmatpush1.xpose.msra.mxu0 %v1901
    %1947 = vmatprep.subr.mxu0 0.0
    %1948 = vmatpush1.xpose.msra.mxu0 %v1904
    %1949 = vmatprep.subr.mxu0 0.0
    %1950 = vmatpush1.xpose.msra.mxu0 %v1907
    %1951 = vmatprep.subr.mxu0 0.0
    %1952 = vmatpush1.xpose.msra.mxu0 %v1910
    %1953 = vmatprep.subr.mxu0 0.0
    %1954 = vmatpush1.xpose.msra.mxu0 %v1913
    %1955 = vmatprep.subr.mxu0 0.0
    %1956 = vmatpush1.xpose.msra.mxu0 %v1916
    %1957 = vmatprep.subr.mxu0 0.0
    %1958 = vmatpush1.xpose.msra.mxu0 %v1919
    %1959 = vmatprep.subr.mxu0 0.0
    %1960 = vmatpush1.xpose.msra.mxu0 %v1922
    %1961 = vmatprep.subr.mxu0 0.0
    %1962 = vmatpush1.xpose.msra.mxu0 %v1925
    %1963 = vmatprep.subr.mxu0 0.0
    %1964 = vmatpush1.xpose.msra.mxu0 %v1928
    %1965 = vmatprep.subr.mxu0 0.0
    %1966 = vmatpush1.xpose.msra.mxu0 %v1931
    %1967 = vmatprep.subr.mxu0 0.0
    %1968 = vmatpush1.xpose.msra.mxu0 %v1934
    %1969 = vmatprep.subr.mxu0 0.0
    %1970 = vmatpush1.xpose.msra.mxu0 %v1937
    %1971 = vmatprep.subr.mxu0 0.0
    %1972 = vmatpush1.xpose.msra.mxu0 0.0
    %1973 = vmatprep.subr.mxu0 0.0
    %1974 = vmatpush1.xpose.msra.mxu0 0.0
    %1975 = vmatprep.subr.mxu0 0.0
    %1976 = vmatpush1.xpose.msra.mxu0 0.0
    %1977 = vmatprep.subr.mxu0 0.0
    %1978 = vmatpush1.xpose.msra.mxu0 0.0
    %1979 = vmatprep.subr.mxu0 0.0
    %1980 = vmatpush1.xpose.msra.mxu0 0.0
    %1981 = vmatprep.subr.mxu0 0.0
    %1982 = vmatpush1.xpose.msra.mxu0 0.0
    %1983 = vmatprep.subr.mxu0 0.0
    %1984 = vmatpush1.xpose.msra.mxu0 0.0
    %1985 = vmatprep.subr.mxu0 0.0
    %1986 = vmatpush1.xpose.msra.mxu0 0.0
    %1987 = vmatprep.subr.mxu0 0.0
    %1988 = vmatpush1.xpose.msra.mxu0 0.0
    %1989 = vmatprep.subr.mxu0 0.0
    %1990 = vmatpush1.xpose.msra.mxu0 0.0
    %1991 = vmatprep.subr.mxu0 0.0
    %1992 = vmatpush1.xpose.msra.mxu0 0.0
    %1993 = vmatprep.subr.mxu0 0.0
    %1994 = vmatpush1.xpose.msra.mxu0 0.0
    %1995 = vmatprep.subr.mxu0 0.0
    %1996 = vmatpush1.xpose.msra.mxu0 0.0
    %1997 = vmatprep.subr.mxu0 0.0
    %1998 = vmatpush1.xpose.msra.mxu0 0.0
    %1999 = vmatprep.subr.mxu0 0.0
    %2000 = vmatpush1.xpose.msra.mxu0 0.0
    %2001 = vmatprep.subr.mxu0 0.0
    %2002 = vmatpush1.xpose.msra.mxu0 0.0
    %2003 = vmatprep.mubr.f32.mxu0 0.0
    %2004 = vmatmul.mubr.f32.gmra.mrb[0].mxu0 %v1844
    %v2005 = vpop.f32.mrb[0].mxu0
    %v2006 = vadd.f32 0.0, %v2005
    %v2007 = vpop.f32.mrb[0].mxu0
    %2008 = vmatprep.mubr.f32.mxu0 0.0
    %2009 = vmatmul.mubr.f32.gmra.mrb[0].mxu0 %v1847
    %v2010 = vpop.f32.mrb[0].mxu0
    %v2011 = vadd.f32 0.0, %v2010
    %v2012 = vpop.f32.mrb[0].mxu0
    %2013 = vmatprep.mubr.f32.mxu0 0.0
    %2014 = vmatmul.mubr.f32.gmra.mrb[0].mxu0 %v1850
    %v2015 = vpop.f32.mrb[0].mxu0
    %v2016 = vadd.f32 0.0, %v2015
    %v2017 = vpop.f32.mrb[0].mxu0
    %2018 = vmatprep.mubr.f32.mxu0 0.0
    %2019 = vmatmul.mubr.f32.gmra.mrb[0].mxu0 %v1853
    %v2020 = vpop.f32.mrb[0].mxu0
    %v2021 = vadd.f32 0.0, %v2020
    %v2022 = vpop.f32.mrb[0].mxu0
    %2023 = vmatprep.mubr.f32.mxu0 0.0
    %2024 = vmatmul.mubr.f32.gmra.mrb[0].mxu0 %v1856
    %v2025 = vpop.f32.mrb[0].mxu0
    %v2026 = vadd.f32 0.0, %v2025
    %v2027 = vpop.f32.mrb[0].mxu0
    %2028 = vmatprep.mubr.f32.mxu0 0.0
    %2029 = vmatmul.mubr.f32.gmra.mrb[0].mxu0 %v1859
    %v2030 = vpop.f32.mrb[0].mxu0
    %v2031 = vadd.f32 0.0, %v2030
    %v2032 = vpop.f32.mrb[0].mxu0
    %2033 = vmatprep.mubr.f32.mxu0 0.0
    %2034 = vmatmul.mubr.f32.gmra.mrb[0].mxu0 %v1862
    %v2035 = vpop.f32.mrb[0].mxu0
    %v2036 = vadd.f32 0.0, %v2035
    %v2037 = vpop.f32.mrb[0].mxu0
    %2038 = vmatprep.mubr.f32.mxu0 0.0
    %2039 = vmatmul.mubr.f32.gmra.mrb[0].mxu0 %v1865
    %v2040 = vpop.f32.mrb[0].mxu0
    %v2041 = vadd.f32 0.0, %v2040
    %v2042 = vpop.f32.mrb[0].mxu0
    %2043 = vmatprep.mubr.f32.mxu0 0.0
    %2044 = vmatmul.mubr.f32.gmra.mrb[0].mxu0 %v1868
    %v2045 = vpop.f32.mrb[0].mxu0
    %v2046 = vadd.f32 0.0, %v2045
    %v2047 = vpop.f32.mrb[0].mxu0
    %2048 = vmatprep.mubr.f32.mxu0 0.0
    %2049 = vmatmul.mubr.f32.gmra.mrb[0].mxu0 %v1871
    %v2050 = vpop.f32.mrb[0].mxu0
    %v2051 = vadd.f32 0.0, %v2050
    %v2052 = vpop.f32.mrb[0].mxu0
    %2053 = vmatprep.mubr.f32.mxu0 0.0
    %2054 = vmatmul.mubr.f32.gmra.mrb[0].mxu0 %v1874
    %v2055 = vpop.f32.mrb[0].mxu0
    %v2056 = vadd.f32 0.0, %v2055
    %v2057 = vpop.f32.mrb[0].mxu0
    %2058 = vmatprep.mubr.f32.mxu0 0.0
    %2059 = vmatmul.mubr.f32.gmra.mrb[0].mxu0 %v1877
    %v2060 = vpop.f32.mrb[0].mxu0
    %v2061 = vadd.f32 0.0, %v2060
    %v2062 = vpop.f32.mrb[0].mxu0
    %2063 = vmatprep.mubr.f32.mxu0 0.0
    %2064 = vmatmul.mubr.f32.gmra.mrb[0].mxu0 %v1880
    %v2065 = vpop.f32.mrb[0].mxu0
    %v2066 = vadd.f32 0.0, %v2065
    %v2067 = vpop.f32.mrb[0].mxu0
    %2068 = vmatprep.mubr.f32.mxu0 0.0
    %2069 = vmatmul.mubr.f32.gmra.mrb[0].mxu0 %v1883
    %v2070 = vpop.f32.mrb[0].mxu0
    %v2071 = vadd.f32 0.0, %v2070
    %v2072 = vpop.f32.mrb[0].mxu0
    %2073 = vmatprep.mubr.f32.mxu0 0.0
    %2074 = vmatmul.mubr.f32.gmra.mrb[0].mxu0 %v1886
    %v2075 = vpop.f32.mrb[0].mxu0
    %v2076 = vadd.f32 0.0, %v2075
    %v2077 = vpop.f32.mrb[0].mxu0
    %2078 = vmatprep.mubr.f32.mxu0 0.0
    %2079 = vmatmul.mubr.f32.gmra.mrb[0].mxu0 %v1889
    %v2080 = vpop.f32.mrb[0].mxu0
    %v2081 = vadd.f32 0.0, %v2080
    %v2082 = vpop.f32.mrb[0].mxu0
    %2083 = vdwg.mxu0
    %v2085 = vsel %vm396, %v252, 0
    %v2088 = vsel %vm396, %v253, 0
    %v2091 = vsel %vm396, %v254, 0
    %v2094 = vsel %vm396, %v255, 0
    %v2097 = vsel %vm396, %v256, 0
    %v2100 = vsel %vm396, %v257, 0
    %v2103 = vsel %vm396, %v258, 0
    %v2106 = vsel %vm396, %v259, 0
    %v2109 = vsel %vm396, %v260, 0
    %v2112 = vsel %vm396, %v261, 0
    %v2115 = vsel %vm396, %v262, 0
    %v2118 = vsel %vm396, %v263, 0
    %v2121 = vsel %vm396, %v264, 0
    %v2124 = vsel %vm396, %v265, 0
    %v2127 = vsel %vm396, %v266, 0
    %v2130 = vsel %vm396, %v267, 0
    %v2133 = vsel %vm396, %v380, 0
    %v2136 = vsel %vm396, %v381, 0
    %v2139 = vsel %vm396, %v382, 0
    %v2142 = vsel %vm396, %v383, 0
    %v2145 = vsel %vm396, %v384, 0
    %v2148 = vsel %vm396, %v385, 0
    %v2151 = vsel %vm396, %v386, 0
    %v2154 = vsel %vm396, %v387, 0
    %v2157 = vsel %vm396, %v388, 0
    %v2160 = vsel %vm396, %v389, 0
    %v2163 = vsel %vm396, %v390, 0
    %v2166 = vsel %vm396, %v391, 0
    %v2169 = vsel %vm396, %v392, 0
    %v2172 = vsel %vm396, %v393, 0
    %v2175 = vsel %vm396, %v394, 0
    %v2178 = vsel %vm396, %v395, 0
    %2180 = vmatprep.subr.mxu0 0.0
    %2181 = vmatpush1.xpose.msra.mxu0 %v2133
    %2182 = vmatprep.subr.mxu0 0.0
    %2183 = vmatpush1.xpose.msra.mxu0 %v2136
    %2184 = vmatprep.subr.mxu0 0.0
    %2185 = vmatpush1.xpose.msra.mxu0 %v2139
    %2186 = vmatprep.subr.mxu0 0.0
    %2187 = vmatpush1.xpose.msra.mxu0 %v2142
    %2188 = vmatprep.subr.mxu0 0.0
    %2189 = vmatpush1.xpose.msra.mxu0 %v2145
    %2190 = vmatprep.subr.mxu0 0.0
    %2191 = vmatpush1.xpose.msra.mxu0 %v2148
    %2192 = vmatprep.subr.mxu0 0.0
    %2193 = vmatpush1.xpose.msra.mxu0 %v2151
    %2194 = vmatprep.subr.mxu0 0.0
    %2195 = vmatpush1.xpose.msra.mxu0 %v2154
    %2196 = vmatprep.subr.mxu0 0.0
    %2197 = vmatpush1.xpose.msra.mxu0 %v2157
    %2198 = vmatprep.subr.mxu0 0.0
    %2199 = vmatpush1.xpose.msra.mxu0 %v2160
    %2200 = vmatprep.subr.mxu0 0.0
    %2201 = vmatpush1.xpose.msra.mxu0 %v2163
    %2202 = vmatprep.subr.mxu0 0.0
    %2203 = vmatpush1.xpose.msra.mxu0 %v2166
    %2204 = vmatprep.subr.mxu0 0.0
    %2205 = vmatpush1.xpose.msra.mxu0 %v2169
    %2206 = vmatprep.subr.mxu0 0.0
    %2207 = vmatpush1.xpose.msra.mxu0 %v2172
    %2208 = vmatprep.subr.mxu0 0.0
    %2209 = vmatpush1.xpose.msra.mxu0 %v2175
    %2210 = vmatprep.subr.mxu0 0.0
    %2211 = vmatpush1.xpose.msra.mxu0 %v2178
    %2212 = vmatprep.subr.mxu0 0.0
    %2213 = vmatpush1.xpose.msra.mxu0 0.0
    %2214 = vmatprep.subr.mxu0 0.0
    %2215 = vmatpush1.xpose.msra.mxu0 0.0
    %2216 = vmatprep.subr.mxu0 0.0
    %2217 = vmatpush1.xpose.msra.mxu0 0.0
    %2218 = vmatprep.subr.mxu0 0.0
    %2219 = vmatpush1.xpose.msra.mxu0 0.0
    %2220 = vmatprep.subr.mxu0 0.0
    %2221 = vmatpush1.xpose.msra.mxu0 0.0
    %2222 = vmatprep.subr.mxu0 0.0
    %2223 = vmatpush1.xpose.msra.mxu0 0.0
    %2224 = vmatprep.subr.mxu0 0.0
    %2225 = vmatpush1.xpose.msra.mxu0 0.0
    %2226 = vmatprep.subr.mxu0 0.0
    %2227 = vmatpush1.xpose.msra.mxu0 0.0
    %2228 = vmatprep.subr.mxu0 0.0
    %2229 = vmatpush1.xpose.msra.mxu0 0.0
    %2230 = vmatprep.subr.mxu0 0.0
    %2231 = vmatpush1.xpose.msra.mxu0 0.0
    %2232 = vmatprep.subr.mxu0 0.0
    %2233 = vmatpush1.xpose.msra.mxu0 0.0
    %2234 = vmatprep.subr.mxu0 0.0
    %2235 = vmatpush1.xpose.msra.mxu0 0.0
    %2236 = vmatprep.subr.mxu0 0.0
    %2237 = vmatpush1.xpose.msra.mxu0 0.0
    %2238 = vmatprep.subr.mxu0 0.0
    %2239 = vmatpush1.xpose.msra.mxu0 0.0
    %2240 = vmatprep.subr.mxu0 0.0
    %2241 = vmatpush1.xpose.msra.mxu0 0.0
    %2242 = vmatprep.subr.mxu0 0.0
    %2243 = vmatpush1.xpose.msra.mxu0 0.0
    %2244 = vmatprep.mubr.f32.mxu0 0.0
    %2245 = vmatmul.mubr.f32.gmra.mrb[0].mxu0 %v2085
    %v2246 = vpop.f32.mrb[0].mxu0
    %v2247 = vadd.f32 0.0, %v2246
    %v2248 = vpop.f32.mrb[0].mxu0
    %2249 = vmatprep.mubr.f32.mxu0 0.0
    %2250 = vmatmul.mubr.f32.gmra.mrb[0].mxu0 %v2088
    %v2251 = vpop.f32.mrb[0].mxu0
    %v2252 = vadd.f32 0.0, %v2251
    %v2253 = vpop.f32.mrb[0].mxu0
    %2254 = vmatprep.mubr.f32.mxu0 0.0
    %2255 = vmatmul.mubr.f32.gmra.mrb[0].mxu0 %v2091
    %v2256 = vpop.f32.mrb[0].mxu0
    %v2257 = vadd.f32 0.0, %v2256
    %v2258 = vpop.f32.mrb[0].mxu0
    %2259 = vmatprep.mubr.f32.mxu0 0.0
    %2260 = vmatmul.mubr.f32.gmra.mrb[0].mxu0 %v2094
    %v2261 = vpop.f32.mrb[0].mxu0
    %v2262 = vadd.f32 0.0, %v2261
    %v2263 = vpop.f32.mrb[0].mxu0
    %2264 = vmatprep.mubr.f32.mxu0 0.0
    %2265 = vmatmul.mubr.f32.gmra.mrb[0].mxu0 %v2097
    %v2266 = vpop.f32.mrb[0].mxu0
    %v2267 = vadd.f32 0.0, %v2266
    %v2268 = vpop.f32.mrb[0].mxu0
    %2269 = vmatprep.mubr.f32.mxu0 0.0
    %2270 = vmatmul.mubr.f32.gmra.mrb[0].mxu0 %v2100
    %v2271 = vpop.f32.mrb[0].mxu0
    %v2272 = vadd.f32 0.0, %v2271
    %v2273 = vpop.f32.mrb[0].mxu0
    %2274 = vmatprep.mubr.f32.mxu0 0.0
    %2275 = vmatmul.mubr.f32.gmra.mrb[0].mxu0 %v2103
    %v2276 = vpop.f32.mrb[0].mxu0
    %v2277 = vadd.f32 0.0, %v2276
    %v2278 = vpop.f32.mrb[0].mxu0
    %2279 = vmatprep.mubr.f32.mxu0 0.0
    %2280 = vmatmul.mubr.f32.gmra.mrb[0].mxu0 %v2106
    %v2281 = vpop.f32.mrb[0].mxu0
    %v2282 = vadd.f32 0.0, %v2281
    %v2283 = vpop.f32.mrb[0].mxu0
    %2284 = vmatprep.mubr.f32.mxu0 0.0
    %2285 = vmatmul.mubr.f32.gmra.mrb[0].mxu0 %v2109
    %v2286 = vpop.f32.mrb[0].mxu0
    %v2287 = vadd.f32 0.0, %v2286
    %v2288 = vpop.f32.mrb[0].mxu0
    %2289 = vmatprep.mubr.f32.mxu0 0.0
    %2290 = vmatmul.mubr.f32.gmra.mrb[0].mxu0 %v2112
    %v2291 = vpop.f32.mrb[0].mxu0
    %v2292 = vadd.f32 0.0, %v2291
    %v2293 = vpop.f32.mrb[0].mxu0
    %2294 = vmatprep.mubr.f32.mxu0 0.0
    %2295 = vmatmul.mubr.f32.gmra.mrb[0].mxu0 %v2115
    %v2296 = vpop.f32.mrb[0].mxu0
    %v2297 = vadd.f32 0.0, %v2296
    %v2298 = vpop.f32.mrb[0].mxu0
    %2299 = vmatprep.mubr.f32.mxu0 0.0
    %2300 = vmatmul.mubr.f32.gmra.mrb[0].mxu0 %v2118
    %v2301 = vpop.f32.mrb[0].mxu0
    %v2302 = vadd.f32 0.0, %v2301
    %v2303 = vpop.f32.mrb[0].mxu0
    %2304 = vmatprep.mubr.f32.mxu0 0.0
    %2305 = vmatmul.mubr.f32.gmra.mrb[0].mxu0 %v2121
    %v2306 = vpop.f32.mrb[0].mxu0
    %v2307 = vadd.f32 0.0, %v2306
    %v2308 = vpop.f32.mrb[0].mxu0
    %2309 = vmatprep.mubr.f32.mxu0 0.0
    %2310 = vmatmul.mubr.f32.gmra.mrb[0].mxu0 %v2124
    %v2311 = vpop.f32.mrb[0].mxu0
    %v2312 = vadd.f32 0.0, %v2311
    %v2313 = vpop.f32.mrb[0].mxu0
    %2314 = vmatprep.mubr.f32.mxu0 0.0
    %2315 = vmatmul.mubr.f32.gmra.mrb[0].mxu0 %v2127
    %v2316 = vpop.f32.mrb[0].mxu0
    %v2317 = vadd.f32 0.0, %v2316
    %v2318 = vpop.f32.mrb[0].mxu0
    %2319 = vmatprep.mubr.f32.mxu0 0.0
    %2320 = vmatmul.mubr.f32.gmra.mrb[0].mxu0 %v2130
    %v2321 = vpop.f32.mrb[0].mxu0
    %v2322 = vadd.f32 0.0, %v2321
    %v2323 = vpop.f32.mrb[0].mxu0
    %2324 = vdwg.mxu0
    %2325 = vst [vmem:[#allocation2] sm:$0xff] %v560
    %2326 = vst [vmem:[#allocation2 + $0x8] sm:$0xff] %v565
    %2327 = vst [vmem:[#allocation2 + $0x10] sm:$0xff] %v570
    %2328 = vst [vmem:[#allocation2 + $0x18] sm:$0xff] %v575
    %2329 = vst [vmem:[#allocation2 + $0x20] sm:$0xff] %v580
    %2330 = vst [vmem:[#allocation2 + $0x28] sm:$0xff] %v585
    %2331 = vst [vmem:[#allocation2 + $0x30] sm:$0xff] %v590
    %2332 = vst [vmem:[#allocation2 + $0x38] sm:$0xff] %v595
    %2333 = vst [vmem:[#allocation2 + $0x40] sm:$0xff] %v600
    %2334 = vst [vmem:[#allocation2 + $0x48] sm:$0xff] %v605
    %2335 = vst [vmem:[#allocation2 + $0x50] sm:$0xff] %v610
    %2336 = vst [vmem:[#allocation2 + $0x58] sm:$0xff] %v615
    %2337 = vst [vmem:[#allocation2 + $0x60] sm:$0xff] %v620
    %2338 = vst [vmem:[#allocation2 + $0x68] sm:$0xff] %v625
    %2339 = vst [vmem:[#allocation2 + $0x70] sm:$0xff] %v630
    %2340 = vst [vmem:[#allocation2 + $0x78] sm:$0xff] %v635
    %2341 = vst [vmem:[#allocation2 + $0x80] sm:$0xff] %v801
    %2342 = vst [vmem:[#allocation2 + $0x88] sm:$0xff] %v806
    %2343 = vst [vmem:[#allocation2 + $0x90] sm:$0xff] %v811
    %2344 = vst [vmem:[#allocation2 + $0x98] sm:$0xff] %v816
    %2345 = vst [vmem:[#allocation2 + $0xa0] sm:$0xff] %v821
    %2346 = vst [vmem:[#allocation2 + $0xa8] sm:$0xff] %v826
    %2347 = vst [vmem:[#allocation2 + $0xb0] sm:$0xff] %v831
    %2348 = vst [vmem:[#allocation2 + $0xb8] sm:$0xff] %v836
    %2349 = vst [vmem:[#allocation2 + $0xc0] sm:$0xff] %v841
    %2350 = vst [vmem:[#allocation2 + $0xc8] sm:$0xff] %v846
    %2351 = vst [vmem:[#allocation2 + $0xd0] sm:$0xff] %v851
    %2352 = vst [vmem:[#allocation2 + $0xd8] sm:$0xff] %v856
    %2353 = vst [vmem:[#allocation2 + $0xe0] sm:$0xff] %v861
    %2354 = vst [vmem:[#allocation2 + $0xe8] sm:$0xff] %v866
    %2355 = vst [vmem:[#allocation2 + $0xf0] sm:$0xff] %v871
    %2356 = vst [vmem:[#allocation2 + $0xf8] sm:$0xff] %v876
    %2357 = vst [vmem:[#allocation2 + $0x100] sm:$0xff] %v1042
    %2358 = vst [vmem:[#allocation2 + $0x108] sm:$0xff] %v1047
    %2359 = vst [vmem:[#allocation2 + $0x110] sm:$0xff] %v1052
    %2360 = vst [vmem:[#allocation2 + $0x118] sm:$0xff] %v1057
    %2361 = vst [vmem:[#allocation2 + $0x120] sm:$0xff] %v1062
    %2362 = vst [vmem:[#allocation2 + $0x128] sm:$0xff] %v1067
    %2363 = vst [vmem:[#allocation2 + $0x130] sm:$0xff] %v1072
    %2364 = vst [vmem:[#allocation2 + $0x138] sm:$0xff] %v1077
    %2365 = vst [vmem:[#allocation2 + $0x140] sm:$0xff] %v1082
    %2366 = vst [vmem:[#allocation2 + $0x148] sm:$0xff] %v1087
    %2367 = vst [vmem:[#allocation2 + $0x150] sm:$0xff] %v1092
    %2368 = vst [vmem:[#allocation2 + $0x158] sm:$0xff] %v1097
    %2369 = vst [vmem:[#allocation2 + $0x160] sm:$0xff] %v1102
    %2370 = vst [vmem:[#allocation2 + $0x168] sm:$0xff] %v1107
    %2371 = vst [vmem:[#allocation2 + $0x170] sm:$0xff] %v1112
    %2372 = vst [vmem:[#allocation2 + $0x178] sm:$0xff] %v1117
    %2373 = vst [vmem:[#allocation2 + $0x180] sm:$0xff] %v1283
    %2374 = vst [vmem:[#allocation2 + $0x188] sm:$0xff] %v1288
    %2375 = vst [vmem:[#allocation2 + $0x190] sm:$0xff] %v1293
    %2376 = vst [vmem:[#allocation2 + $0x198] sm:$0xff] %v1298
    %2377 = vst [vmem:[#allocation2 + $0x1a0] sm:$0xff] %v1303
    %2378 = vst [vmem:[#allocation2 + $0x1a8] sm:$0xff] %v1308
    %2379 = vst [vmem:[#allocation2 + $0x1b0] sm:$0xff] %v1313
    %2380 = vst [vmem:[#allocation2 + $0x1b8] sm:$0xff] %v1318
    %2381 = vst [vmem:[#allocation2 + $0x1c0] sm:$0xff] %v1323
    %2382 = vst [vmem:[#allocation2 + $0x1c8] sm:$0xff] %v1328
    %2383 = vst [vmem:[#allocation2 + $0x1d0] sm:$0xff] %v1333
    %2384 = vst [vmem:[#allocation2 + $0x1d8] sm:$0xff] %v1338
    %2385 = vst [vmem:[#allocation2 + $0x1e0] sm:$0xff] %v1343
    %2386 = vst [vmem:[#allocation2 + $0x1e8] sm:$0xff] %v1348
    %2387 = vst [vmem:[#allocation2 + $0x1f0] sm:$0xff] %v1353
    %2388 = vst [vmem:[#allocation2 + $0x1f8] sm:$0xff] %v1358
    %2389 = vst [vmem:[#allocation2 + $0x200] sm:$0xff] %v1524
    %2390 = vst [vmem:[#allocation2 + $0x208] sm:$0xff] %v1529
    %2391 = vst [vmem:[#allocation2 + $0x210] sm:$0xff] %v1534
    %2392 = vst [vmem:[#allocation2 + $0x218] sm:$0xff] %v1539
    %2393 = vst [vmem:[#allocation2 + $0x220] sm:$0xff] %v1544
    %2394 = vst [vmem:[#allocation2 + $0x228] sm:$0xff] %v1549
    %2395 = vst [vmem:[#allocation2 + $0x230] sm:$0xff] %v1554
    %2396 = vst [vmem:[#allocation2 + $0x238] sm:$0xff] %v1559
    %2397 = vst [vmem:[#allocation2 + $0x240] sm:$0xff] %v1564
    %2398 = vst [vmem:[#allocation2 + $0x248] sm:$0xff] %v1569
    %2399 = vst [vmem:[#allocation2 + $0x250] sm:$0xff] %v1574
    %2400 = vst [vmem:[#allocation2 + $0x258] sm:$0xff] %v1579
    %2401 = vst [vmem:[#allocation2 + $0x260] sm:$0xff] %v1584
    %2402 = vst [vmem:[#allocation2 + $0x268] sm:$0xff] %v1589
    %2403 = vst [vmem:[#allocation2 + $0x270] sm:$0xff] %v1594
    %2404 = vst [vmem:[#allocation2 + $0x278] sm:$0xff] %v1599
    %2405 = vst [vmem:[#allocation2 + $0x280] sm:$0xff] %v1765
    %2406 = vst [vmem:[#allocation2 + $0x288] sm:$0xff] %v1770
    %2407 = vst [vmem:[#allocation2 + $0x290] sm:$0xff] %v1775
    %2408 = vst [vmem:[#allocation2 + $0x298] sm:$0xff] %v1780
    %2409 = vst [vmem:[#allocation2 + $0x2a0] sm:$0xff] %v1785
    %2410 = vst [vmem:[#allocation2 + $0x2a8] sm:$0xff] %v1790
    %2411 = vst [vmem:[#allocation2 + $0x2b0] sm:$0xff] %v1795
    %2412 = vst [vmem:[#allocation2 + $0x2b8] sm:$0xff] %v1800
    %2413 = vst [vmem:[#allocation2 + $0x2c0] sm:$0xff] %v1805
    %2414 = vst [vmem:[#allocation2 + $0x2c8] sm:$0xff] %v1810
    %2415 = vst [vmem:[#allocation2 + $0x2d0] sm:$0xff] %v1815
    %2416 = vst [vmem:[#allocation2 + $0x2d8] sm:$0xff] %v1820
    %2417 = vst [vmem:[#allocation2 + $0x2e0] sm:$0xff] %v1825
    %2418 = vst [vmem:[#allocation2 + $0x2e8] sm:$0xff] %v1830
    %2419 = vst [vmem:[#allocation2 + $0x2f0] sm:$0xff] %v1835
    %2420 = vst [vmem:[#allocation2 + $0x2f8] sm:$0xff] %v1840
    %2421 = vst [vmem:[#allocation2 + $0x300] sm:$0xff] %v2006
    %2422 = vst [vmem:[#allocation2 + $0x308] sm:$0xff] %v2011
    %2423 = vst [vmem:[#allocation2 + $0x310] sm:$0xff] %v2016
    %2424 = vst [vmem:[#allocation2 + $0x318] sm:$0xff] %v2021
    %2425 = vst [vmem:[#allocation2 + $0x320] sm:$0xff] %v2026
    %2426 = vst [vmem:[#allocation2 + $0x328] sm:$0xff] %v2031
    %2427 = vst [vmem:[#allocation2 + $0x330] sm:$0xff] %v2036
    %2428 = vst [vmem:[#allocation2 + $0x338] sm:$0xff] %v2041
    %2429 = vst [vmem:[#allocation2 + $0x340] sm:$0xff] %v2046
    %2430 = vst [vmem:[#allocation2 + $0x348] sm:$0xff] %v2051
    %2431 = vst [vmem:[#allocation2 + $0x350] sm:$0xff] %v2056
    %2432 = vst [vmem:[#allocation2 + $0x358] sm:$0xff] %v2061
    %2433 = vst [vmem:[#allocation2 + $0x360] sm:$0xff] %v2066
    %2434 = vst [vmem:[#allocation2 + $0x368] sm:$0xff] %v2071
    %2435 = vst [vmem:[#allocation2 + $0x370] sm:$0xff] %v2076
    %2436 = vst [vmem:[#allocation2 + $0x378] sm:$0xff] %v2081
    %2437 = vst [vmem:[#allocation2 + $0x380] sm:$0xff] %v2247
    %2438 = vst [vmem:[#allocation2 + $0x388] sm:$0xff] %v2252
    %2439 = vst [vmem:[#allocation2 + $0x390] sm:$0xff] %v2257
    %2440 = vst [vmem:[#allocation2 + $0x398] sm:$0xff] %v2262
    %2441 = vst [vmem:[#allocation2 + $0x3a0] sm:$0xff] %v2267
    %2442 = vst [vmem:[#allocation2 + $0x3a8] sm:$0xff] %v2272
    %2443 = vst [vmem:[#allocation2 + $0x3b0] sm:$0xff] %v2277
    %2444 = vst [vmem:[#allocation2 + $0x3b8] sm:$0xff] %v2282
    %2445 = vst [vmem:[#allocation2 + $0x3c0] sm:$0xff] %v2287
    %2446 = vst [vmem:[#allocation2 + $0x3c8] sm:$0xff] %v2292
    %2447 = vst [vmem:[#allocation2 + $0x3d0] sm:$0xff] %v2297
    %2448 = vst [vmem:[#allocation2 + $0x3d8] sm:$0xff] %v2302
    %2449 = vst [vmem:[#allocation2 + $0x3e0] sm:$0xff] %v2307
    %2450 = vst [vmem:[#allocation2 + $0x3e8] sm:$0xff] %v2312
    %2451 = vst [vmem:[#allocation2 + $0x3f0] sm:$0xff] %v2317
    %2452 = vst [vmem:[#allocation2 + $0x3f8] sm:$0xff] %v2322
    // Predicated region
    $region10: #{tpu_custom_call.1} parent=1 // pred_check
      _
    $region11: #{tpu_custom_call.1} parent=1 // pred_check_branch
      %2454 = sbr.rel (0) target = $region13
    $region12: #{tpu_custom_call.1} parent=1 // pred_region
      %s2456 = ssub.s32 16384, 16384
      %2457 = vsyncadd [#allocation3], %s2456
      %s2458 = sshll.u32 [#allocation2], 4
      %s2459 = int_to_ptr.vmem [resolvable:$true] %s2458
      %2464 = dma.vmem_to_hbm [thread:$0]  %s2459, 16384, %s2, [#allocation3], 128, 128, 8
    $region13: #{tpu_custom_call.1} parent=1 // pred_fallthru
      _
    // Predicated region
    $region14: #{tpu_custom_call.1} parent=1 // pred_check
      _
    $region15: #{tpu_custom_call.1} parent=1 // pred_check_branch
      %2466 = sbr.rel (0) target = $region17
    $region16: #{tpu_custom_call.1} parent=1 // pred_region
      %2467 = dma.done [#allocation3], 16384
    $region17: #{tpu_custom_call.1} parent=1 // pred_fallthru
      _
    %2468 = vsyncpa [#allocation3], 1

</llo_original>
